<compile_context>
chip_gen: v7x
topology: tpu7x:2x2x1
jax: 0.10.0
libtpu: 0.0.40
codegen_flags: <defaults>
</compile_context>

<pallas_src>
import math

import jax
import jax.numpy as jnp
from jax.experimental import pallas as pl
from jax.experimental.pallas import tpu as pltpu


# ----------------------------------------------------------------------------- kernel
def fused_encoder_kernel(x_ref, ids_ref, len_ref,
                         wqkv_ref, bqkv_ref, wo_ref, w1_ref, b1_ref, w2_ref, vec_ref,
                         out_ref):
    """Two fused post-LN transformer encoder layers + last-valid-step gather.

    Per grid step (one batch chunk of TB sequences):
      x_ref   : (TB, S, H) f32   item+position embeddings
      ids_ref : (TB, 1, S) int32 item ids (0 = padding)
      len_ref : (TB, 1, 1) int32 valid sequence lengths
      wqkv_ref: (2, H, 3H) bf16  packed Q|K|V weights (1/sqrt(H) folded into Q)
      bqkv_ref: (2, 1, 3H) f32   packed Q|K|V biases  (scale folded into Q)
      wo_ref  : (2, H, H)  bf16  attention output projection
      w1_ref  : (2, H, I)  bf16, b1_ref: (2, 1, I) f32, w2_ref: (2, I, H) bf16
      vec_ref : (2, 6, H)  f32   rows = [bo, g1, be1, g2, be2, b2]
      out_ref : (TB, 1, H) f32
    """
    f32 = jnp.float32
    bf16 = jnp.bfloat16
    NEG = f32(-1e9)
    TB, S, H = x_ref.shape

    def layer_norm(h, g, b):                         # f32 VPU/XLU math
        mu = jnp.mean(h, axis=-1, keepdims=True)
        c = h - mu
        var = jnp.mean(c * c, axis=-1, keepdims=True)
        return c * jax.lax.rsqrt(var + 1e-5) * g + b

    def softmax(s):                                  # row softmax over last axis, f32
        s = s - jnp.max(s, axis=-1, keepdims=True)
        p = jnp.exp(s)
        return p * pl.reciprocal(jnp.sum(p, axis=-1, keepdims=True), approx=True)

    def mm(a, w):                                    # bf16 MXU matmul, f32 accumulate
        return jnp.dot(a.astype(bf16), w, preferred_element_type=f32)

    # ---- masks built in-kernel from tiny int32 blocks (no HBM mask tensor) ----
    key_ok = ids_ref[...] != 0                                           # (TB, 1, S)
    q_pos = jax.lax.broadcasted_iota(jnp.int32, (1, S, S), 1)
    k_pos = jax.lax.broadcasted_iota(jnp.int32, (1, S, S), 2)
    allowed1 = jnp.logical_and(k_pos <= q_pos, key_ok)                   # (TB, S, S)

    last_pos = jnp.maximum(len_ref[...].reshape(TB, 1) - 1, 0)           # (TB, 1)
    k_pos2 = jax.lax.broadcasted_iota(jnp.int32, (1, S), 1)              # (1, S)
    key_ok2 = key_ok.reshape(TB, S)
    allowed2 = jnp.logical_and(k_pos2 <= last_pos, key_ok2)              # (TB, S)
    sel = (k_pos2 == last_pos).astype(f32).reshape(TB, S, 1)             # one-hot last step

    # -------------------- layer 0 : self.net[0] (all TB*S rows) ---------------
    x2 = x_ref[...].reshape(TB * S, H)                                   # f32 residual
    vec0 = vec_ref[0]                                                    # (6, H)
    qkv = mm(x2, wqkv_ref[0]) + bqkv_ref[0]                              # (TB*S, 3H)
    q1 = qkv[:, 0:H].reshape(TB, S, H)
    k1 = qkv[:, H:2 * H].reshape(TB, S, H)
    v1 = qkv[:, 2 * H:3 * H].reshape(TB, S, H)
    s1 = jnp.einsum('bqd,bkd->bqk', q1.astype(bf16), k1.astype(bf16),
                    preferred_element_type=f32)                          # (TB, S, S)
    p1 = softmax(jnp.where(allowed1, s1, NEG))
    a1 = jnp.einsum('bqk,bkd->bqd', p1.astype(bf16), v1.astype(bf16),
                    preferred_element_type=f32).reshape(TB * S, H)
    a1 = mm(a1, wo_ref[0]) + vec0[0:1]
    h1 = layer_norm(x2 + a1, vec0[1:2], vec0[2:3])
    f1 = jnp.maximum(mm(h1, w1_ref[0]) + b1_ref[0], 0.0)
    f1 = mm(f1, w2_ref[0]) + vec0[5:6]
    h1 = layer_norm(h1 + f1, vec0[3:4], vec0[4:5])                       # (TB*S, H)

    # ------------- layer 1 : self.recommender, last-valid query only ----------
    vec1 = vec_ref[1]
    h1_3 = h1.reshape(TB, S, H)
    h_last = jnp.sum(h1_3 * sel, axis=1)                                 # (TB, H) gather first
    wqkv1 = wqkv_ref[1]
    kv = mm(h1, wqkv1[:, H:3 * H]) + bqkv_ref[1][:, H:3 * H]             # K|V for all rows
    k2 = kv[:, 0:H].reshape(TB, S, H)
    v2 = kv[:, H:2 * H].reshape(TB, S, H)
    q2 = mm(h_last, wqkv1[:, 0:H]) + bqkv_ref[1][:, 0:H]                 # Q only for gathered row
    s2 = jnp.sum(q2.reshape(TB, 1, H) * k2, axis=-1)                     # (TB, S)
    p2 = softmax(jnp.where(allowed2, s2, NEG))
    a2 = jnp.sum(p2.reshape(TB, S, 1) * v2, axis=1)                      # (TB, H)
    a2 = mm(a2, wo_ref[1]) + vec1[0:1]
    h2 = layer_norm(h_last + a2, vec1[1:2], vec1[2:3])
    f2 = jnp.maximum(mm(h2, w1_ref[1]) + b1_ref[1], 0.0)
    f2 = mm(f2, w2_ref[1]) + vec1[5:6]
    out = layer_norm(h2 + f2, vec1[3:4], vec1[4:5])
    out_ref[...] = out.reshape(TB, 1, H)


# ----------------------------------------------------------------------------- wrapper
def fused_encoder(x, ids, seq_len, packed, *, tb=None):
    """Fused net[0] + recommender + gather, gridded over batch chunks."""
    B, S, H = x.shape
    I = packed['w1'].shape[2]

    if tb is None:
        tb = max(1, min(8, B // 2)) if B >= 2 else 1   # >=2 chunks when possible (v7x 2 TCs)
    TB = max(1, min(tb, B))
    B_pad = ((B + TB - 1) // TB) * TB
    if B_pad != B:
        pad = B_pad - B
        x = jnp.pad(x, ((0, pad), (0, 0), (0, 0)))
        ids = jnp.pad(ids, ((0, pad), (0, 0)))
        seq_len = jnp.pad(seq_len, ((0, pad),), constant_values=1)

    ids3 = ids.reshape(B_pad, 1, S).astype(jnp.int32)
    len3 = seq_len.reshape(B_pad, 1, 1).astype(jnp.int32)

    def batch_spec(shape):        # slice leading batch dim by TB; last two dims stay full
        rest = tuple(shape[1:])
        zeros = (0,) * len(rest)
        return pl.BlockSpec((TB,) + rest, lambda b, _z=zeros: (b,) + _z)

    def resident_spec(shape):     # full array, constant block index -> stays VMEM-resident
        zeros = (0,) * len(shape)
        return pl.BlockSpec(tuple(shape), lambda b, _z=zeros: _z)

    weight_args = [packed[n] for n in ('wqkv', 'bqkv', 'wo', 'w1', 'b1', 'w2', 'vec')]

    # advisory cost estimate so XLA can overlap neighbouring ops with this kernel
    BS = B_pad * S
    flops = (2 * BS * H * 3 * H + 4 * B_pad * S * S * H + 2 * BS * H * H + 4 * BS * H * I
             + 2 * BS * H * 2 * H + 4 * B_pad * H * H + 4 * B_pad * S * H + 4 * B_pad * H * I)
    transcendentals = B_pad * S * S + B_pad * S + 4 * BS
    bytes_accessed = (4 * (x.size + ids3.size + len3.size + B_pad * H)
                      + sum(int(w.size) * w.dtype.itemsize for w in weight_args))

    out = pl.pallas_call(
        fused_encoder_kernel,
        out_shape=jax.ShapeDtypeStruct((B_pad, 1, H), jnp.float32),
        grid=(B_pad // TB,),
        in_specs=([batch_spec(x.shape), batch_spec(ids3.shape), batch_spec(len3.shape)]
                  + [resident_spec(w.shape) for w in weight_args]),
        out_specs=batch_spec((B_pad, 1, H)),
        compiler_params=pltpu.CompilerParams(
            dimension_semantics=("parallel",),            # batch chunks are independent
            vmem_limit_bytes=32 * 1024 * 1024),
        cost_estimate=pl.CostEstimate(flops=int(flops),
                                      transcendentals=int(transcendentals),
                                      bytes_accessed=int(bytes_accessed)),
    )(x, ids3, len3, *weight_args)
    return out.reshape(B_pad, H)[:B]


# ----------------------------------------------------------------------------- params
def init_layer_params(key, hidden, inner):
    ks = jax.random.split(key, 6)
    s = 0.02
    return {
        'wq': s * jax.random.normal(ks[0], (hidden, hidden), jnp.float32),
        'wk': s * jax.random.normal(ks[1], (hidden, hidden), jnp.float32),
        'wv': s * jax.random.normal(ks[2], (hidden, hidden), jnp.float32),
        'wo': s * jax.random.normal(ks[3], (hidden, hidden), jnp.float32),
        'bq': jnp.zeros((1, hidden), jnp.float32),
        'bk': jnp.zeros((1, hidden), jnp.float32),
        'bv': jnp.zeros((1, hidden), jnp.float32),
        'bo': jnp.zeros((1, hidden), jnp.float32),
        'g1': jnp.ones((1, hidden), jnp.float32),
        'be1': jnp.zeros((1, hidden), jnp.float32),
        'g2': jnp.ones((1, hidden), jnp.float32),
        'be2': jnp.zeros((1, hidden), jnp.float32),
        'w1': s * jax.random.normal(ks[4], (hidden, inner), jnp.float32),
        'b1': jnp.zeros((1, inner), jnp.float32),
        'w2': s * jax.random.normal(ks[5], (inner, hidden), jnp.float32),
        'b2': jnp.zeros((1, hidden), jnp.float32),
    }


def pack_layer_params(layers, hidden):
    """Stack per-layer params; fold 1/sqrt(H) into Q (single head); bf16 matmul weights.

    Assumes x @ W layout (columns concatenated); transposing is required if loading
    real PyTorch in_proj_weight.
    """
    scale = jnp.float32(1.0 / math.sqrt(hidden))

    def one(p):
        wqkv = jnp.concatenate([p['wq'] * scale, p['wk'], p['wv']], axis=1)   # (H, 3H)
        bqkv = jnp.concatenate([p['bq'] * scale, p['bk'], p['bv']], axis=1)   # (1, 3H)
        vec = jnp.concatenate([p['bo'], p['g1'], p['be1'],
                               p['g2'], p['be2'], p['b2']], axis=0)           # (6, H)
        return (wqkv.astype(jnp.bfloat16), bqkv, p['wo'].astype(jnp.bfloat16),
                p['w1'].astype(jnp.bfloat16), p['b1'],
                p['w2'].astype(jnp.bfloat16), vec)

    packed_each = [one(p) for p in layers]
    names = ['wqkv', 'bqkv', 'wo', 'w1', 'b1', 'w2', 'vec']
    return {n: jnp.stack([pe[i] for pe in packed_each], axis=0)
            for i, n in enumerate(names)}


def init_model_params(key, n_items, hidden):
    inner = hidden * 4
    k_item, k_pos, k_net, k_rec = jax.random.split(key, 4)
    item_emb = 0.02 * jax.random.normal(k_item, (n_items, hidden), jnp.float32)
    item_emb = item_emb.at[0].set(0.0)  # padding_idx=0
    pos_emb = 0.02 * jax.random.normal(k_pos, (100, hidden), jnp.float32)
    layers = [init_layer_params(k_net, hidden, inner),     # self.net[0]
              init_layer_params(k_rec, hidden, inner)]     # self.recommender
    return {
        'item_emb': item_emb,
        'pos_emb': pos_emb,
        'packed': pack_layer_params(layers, hidden),        # one-time packing at init
    }


# ----------------------------------------------------------------------------- forward
@jax.jit
def model_forward(params, input_session_ids, item_seq_len):
    """Mirrors Model.forward(input_session_ids, item_seq_len) -> (B, H)."""
    B, S = input_session_ids.shape
    # seq2tensor: item embedding + position embedding (dropout = identity in eval)
    # TODO(synk): fuse this embedding gather into the kernel (scalar-prefetch ids +
    #             in-kernel row gather) to remove the (B,S,H) HBM round trip.
    x = params['item_emb'][input_session_ids] + params['pos_emb'][:S][None, :, :]
    return fused_encoder(x.astype(jnp.float32),
                         input_session_ids.astype(jnp.int32),
                         item_seq_len.astype(jnp.int32),
                         params['packed'])


# ----------------------------------------------------------------------------- main
if __name__ == "__main__":
    n_items = 50
    hidden = 32
    B, S = 2, 8

    key = jax.random.PRNGKey(0)
    params = init_model_params(key, n_items, hidden)

    # left-aligned sequences with trailing padding (0 = pad token)
    input_session_ids = jnp.array(
        [[3, 7, 1, 9, 4, 0, 0, 0],
         [5, 2, 8, 6, 1, 7, 3, 0]], dtype=jnp.int32)
    item_seq_len = (input_session_ids > 0).sum(-1).astype(jnp.int32)

    out = model_forward(params, input_session_ids, item_seq_len)
    jax.block_until_ready(out)
    assert out.shape == (B, hidden)
    assert bool(jnp.all(jnp.isfinite(out)))
    print("KERNEL_OK")
</pallas_src>

<mosaic_0001>
module attributes {stable_mosaic.version = 11 : i64} {
  func.func @fused_encoder_kernel(%arg0: i32, %arg1: memref<1x8x32xf32, #tpu.memory_space<vmem>>, %arg2: memref<1x1x8xi32, #tpu.memory_space<vmem>>, %arg3: memref<1x1x1xi32, #tpu.memory_space<vmem>>, %arg4: memref<2x32x96xbf16, #tpu.memory_space<vmem>>, %arg5: memref<2x1x96xf32, #tpu.memory_space<vmem>>, %arg6: memref<2x32x32xbf16, #tpu.memory_space<vmem>>, %arg7: memref<2x32x128xbf16, #tpu.memory_space<vmem>>, %arg8: memref<2x1x128xf32, #tpu.memory_space<vmem>>, %arg9: memref<2x128x32xbf16, #tpu.memory_space<vmem>>, %arg10: memref<2x6x32xf32, #tpu.memory_space<vmem>>, %arg11: memref<1x1x32xf32, #tpu.memory_space<vmem>>) attributes {dimension_semantics = [#tpu.dimension_semantics<parallel>], iteration_bounds = array<i64: 2>, scalar_prefetch = 0 : i64, scratch_operands = 0 : i64, tpu.core_type = #tpu.core_type<tc>, window_params = [{transform_indices = @transform_0, window_bounds = array<i64: 1, 8, 32>}, {transform_indices = @transform_1, window_bounds = array<i64: 1, 1, 8>}, {transform_indices = @transform_2, window_bounds = array<i64: 1, 1, 1>}, {pipeline_mode = #tpu.pipeline_mode<synchronous>, transform_indices = @transform_3, window_bounds = array<i64: 2, 32, 96>}, {pipeline_mode = #tpu.pipeline_mode<synchronous>, transform_indices = @transform_4, window_bounds = array<i64: 2, 1, 96>}, {pipeline_mode = #tpu.pipeline_mode<synchronous>, transform_indices = @transform_5, window_bounds = array<i64: 2, 32, 32>}, {pipeline_mode = #tpu.pipeline_mode<synchronous>, transform_indices = @transform_6, window_bounds = array<i64: 2, 32, 128>}, {pipeline_mode = #tpu.pipeline_mode<synchronous>, transform_indices = @transform_7, window_bounds = array<i64: 2, 1, 128>}, {pipeline_mode = #tpu.pipeline_mode<synchronous>, transform_indices = @transform_8, window_bounds = array<i64: 2, 128, 32>}, {pipeline_mode = #tpu.pipeline_mode<synchronous>, transform_indices = @transform_9, window_bounds = array<i64: 2, 6, 32>}, {transform_indices = @transform_10, window_bounds = array<i64: 1, 1, 32>}]} {
    %c0 = arith.constant 0 : index
    %c0_0 = arith.constant 0 : index
    %c0_1 = arith.constant 0 : index
    %0 = vector.load %arg2[%c0, %c0_0, %c0_1] : memref<1x1x8xi32, #tpu.memory_space<vmem>>, vector<1x1x8xi32>
    %c0_i32 = arith.constant 0 : i32
    %1 = vector.broadcast %c0_i32 : i32 to vector<1x1x8xi32>
    %2 = arith.cmpi ne, %0, %1 : vector<1x1x8xi32>
    %3 = tpu.iota {dimensions = array<i32: 1>} : vector<1x8x8xi32>
    %4 = tpu.iota {dimensions = array<i32: 2>} : vector<1x8x8xi32>
    %5 = arith.cmpi sle, %4, %3 : vector<1x8x8xi32>
    %6 = vector.broadcast %2 : vector<1x1x8xi1> to vector<1x8x8xi1>
    %7 = arith.andi %5, %6 : vector<1x8x8xi1>
    %c0_2 = arith.constant 0 : index
    %c0_3 = arith.constant 0 : index
    %c0_4 = arith.constant 0 : index
    %8 = vector.load %arg3[%c0_2, %c0_3, %c0_4] : memref<1x1x1xi32, #tpu.memory_space<vmem>>, vector<1x1x1xi32>
    %9 = vector.shape_cast %8 : vector<1x1x1xi32> to vector<1x1xi32>
    %c1_i32 = arith.constant 1 : i32
    %10 = vector.broadcast %c1_i32 : i32 to vector<1x1xi32>
    %11 = arith.subi %9, %10 : vector<1x1xi32>
    %c0_i32_5 = arith.constant 0 : i32
    %12 = vector.broadcast %c0_i32_5 : i32 to vector<1x1xi32>
    %13 = arith.maxsi %11, %12 : vector<1x1xi32>
    %14 = tpu.iota {dimensions = array<i32: 1>} : vector<1x8xi32>
    %15 = vector.shape_cast %2 : vector<1x1x8xi1> to vector<1x8xi1>
    %16 = vector.broadcast %13 : vector<1x1xi32> to vector<1x8xi32>
    %17 = arith.cmpi sle, %14, %16 : vector<1x8xi32>
    %18 = arith.andi %17, %15 : vector<1x8xi1>
    %19 = vector.broadcast %13 : vector<1x1xi32> to vector<1x8xi32>
    %20 = arith.cmpi eq, %14, %19 : vector<1x8xi32>
    %21 = arith.extui %20 : vector<1x8xi1> to vector<1x8xi32>
    %22 = arith.sitofp %21 : vector<1x8xi32> to vector<1x8xf32>
    %23 = vector.shape_cast %22 : vector<1x8xf32> to vector<1x8x1xf32>
    %c0_6 = arith.constant 0 : index
    %c0_7 = arith.constant 0 : index
    %c0_8 = arith.constant 0 : index
    %24 = vector.load %arg1[%c0_6, %c0_7, %c0_8] : memref<1x8x32xf32, #tpu.memory_space<vmem>>, vector<1x8x32xf32>
    %25 = vector.shape_cast %24 : vector<1x8x32xf32> to vector<8x32xf32>
    %c0_9 = arith.constant 0 : index
    %c0_10 = arith.constant 0 : index
    %c0_11 = arith.constant 0 : index
    %26 = vector.load %arg10[%c0_9, %c0_10, %c0_11] : memref<2x6x32xf32, #tpu.memory_space<vmem>>, vector<1x6x32xf32>
    %27 = vector.shape_cast %26 : vector<1x6x32xf32> to vector<6x32xf32>
    %c0_12 = arith.constant 0 : index
    %c0_13 = arith.constant 0 : index
    %c0_14 = arith.constant 0 : index
    %28 = vector.load %arg4[%c0_12, %c0_13, %c0_14] : memref<2x32x96xbf16, #tpu.memory_space<vmem>>, vector<1x32x96xbf16>
    %29 = vector.shape_cast %28 : vector<1x32x96xbf16> to vector<32x96xbf16>
    %30 = arith.truncf %25 : vector<8x32xf32> to vector<8x32xbf16>
    %cst = arith.constant dense<0.000000e+00> : vector<8x96xf32>
    %31 = tpu.matmul %30, %29, %cst {dimension_numbers = #tpu.dot_dimension_numbers<[1], [0], [0], [1], [0, 0, 1, 1], [], []>} : vector<8x32xbf16>, vector<32x96xbf16>, vector<8x96xf32> -> vector<8x96xf32>
    %c0_15 = arith.constant 0 : index
    %c0_16 = arith.constant 0 : index
    %c0_17 = arith.constant 0 : index
    %32 = vector.load %arg5[%c0_15, %c0_16, %c0_17] : memref<2x1x96xf32, #tpu.memory_space<vmem>>, vector<1x1x96xf32>
    %33 = vector.shape_cast %32 : vector<1x1x96xf32> to vector<1x96xf32>
    %34 = vector.broadcast %33 : vector<1x96xf32> to vector<8x96xf32>
    %35 = arith.addf %31, %34 : vector<8x96xf32>
    %36 = vector.extract_strided_slice %35 {offsets = [0, 0], sizes = [8, 32], strides = [1, 1]} : vector<8x96xf32> to vector<8x32xf32>
    %37 = vector.shape_cast %36 : vector<8x32xf32> to vector<1x8x32xf32>
    %38 = vector.extract_strided_slice %35 {offsets = [0, 32], sizes = [8, 32], strides = [1, 1]} : vector<8x96xf32> to vector<8x32xf32>
    %39 = vector.shape_cast %38 : vector<8x32xf32> to vector<1x8x32xf32>
    %40 = vector.extract_strided_slice %35 {offsets = [0, 64], sizes = [8, 32], strides = [1, 1]} : vector<8x96xf32> to vector<8x32xf32>
    %41 = vector.shape_cast %40 : vector<8x32xf32> to vector<1x8x32xf32>
    %42 = arith.truncf %37 : vector<1x8x32xf32> to vector<1x8x32xbf16>
    %43 = arith.truncf %39 : vector<1x8x32xf32> to vector<1x8x32xbf16>
    "tpu.trace_start"() <{level = 10 : i32, message = "bqd,bkd->bqk"}> : () -> ()
    %cst_18 = arith.constant dense<0.000000e+00> : vector<1x8x8xf32>
    %44 = tpu.matmul %42, %43, %cst_18 {dimension_numbers = #tpu.dot_dimension_numbers<[2], [2], [1], [1], [0, 0, 0, 1, 1, 1], [0], [0]>} : vector<1x8x32xbf16>, vector<1x8x32xbf16>, vector<1x8x8xf32> -> vector<1x8x8xf32>
    %cst_19 = arith.constant -1.000000e+09 : f32
    "tpu.trace_stop"() : () -> ()
    %45 = vector.broadcast %cst_19 : f32 to vector<1x8x8xf32>
    %46 = arith.select %7, %44, %45 : vector<1x8x8xi1>, vector<1x8x8xf32>
    %cst_20 = arith.constant dense<0xFF800000> : vector<1x8xf32>
    %47 = vector.multi_reduction <maximumf>, %46, %cst_20 [2] : vector<1x8x8xf32> to vector<1x8xf32>
    %48 = vector.shape_cast %47 : vector<1x8xf32> to vector<1x8x1xf32>
    %49 = vector.broadcast %48 : vector<1x8x1xf32> to vector<1x8x8xf32>
    %50 = arith.subf %46, %49 : vector<1x8x8xf32>
    %51 = math.exp %50 : vector<1x8x8xf32>
    %cst_21 = arith.constant dense<0.000000e+00> : vector<1x8xf32>
    %52 = vector.multi_reduction <add>, %51, %cst_21 [2] : vector<1x8x8xf32> to vector<1x8xf32>
    %53 = vector.shape_cast %52 : vector<1x8xf32> to vector<1x8x1xf32>
    %54 = tpu.reciprocal %53 {approx = true} : vector<1x8x1xf32> -> vector<1x8x1xf32>
    %55 = vector.broadcast %54 : vector<1x8x1xf32> to vector<1x8x8xf32>
    %56 = arith.mulf %51, %55 : vector<1x8x8xf32>
    %57 = arith.truncf %56 : vector<1x8x8xf32> to vector<1x8x8xbf16>
    %58 = arith.truncf %41 : vector<1x8x32xf32> to vector<1x8x32xbf16>
    "tpu.trace_start"() <{level = 10 : i32, message = "bqk,bkd->bqd"}> : () -> ()
    %cst_22 = arith.constant dense<0.000000e+00> : vector<1x8x32xf32>
    %59 = tpu.matmul %57, %58, %cst_22 {dimension_numbers = #tpu.dot_dimension_numbers<[2], [1], [1], [2], [0, 0, 0, 1, 1, 2], [0], [0]>} : vector<1x8x8xbf16>, vector<1x8x32xbf16>, vector<1x8x32xf32> -> vector<1x8x32xf32>
    "tpu.trace_stop"() : () -> ()
    %60 = vector.shape_cast %59 : vector<1x8x32xf32> to vector<8x32xf32>
    %c0_23 = arith.constant 0 : index
    %c0_24 = arith.constant 0 : index
    %c0_25 = arith.constant 0 : index
    %61 = vector.load %arg6[%c0_23, %c0_24, %c0_25] : memref<2x32x32xbf16, #tpu.memory_space<vmem>>, vector<1x32x32xbf16>
    %62 = vector.shape_cast %61 : vector<1x32x32xbf16> to vector<32x32xbf16>
    %63 = arith.truncf %60 : vector<8x32xf32> to vector<8x32xbf16>
    %cst_26 = arith.constant dense<0.000000e+00> : vector<8x32xf32>
    %64 = tpu.matmul %63, %62, %cst_26 {dimension_numbers = #tpu.dot_dimension_numbers<[1], [0], [0], [1], [0, 0, 1, 1], [], []>} : vector<8x32xbf16>, vector<32x32xbf16>, vector<8x32xf32> -> vector<8x32xf32>
    %65 = vector.extract_strided_slice %27 {offsets = [0, 0], sizes = [1, 32], strides = [1, 1]} : vector<6x32xf32> to vector<1x32xf32>
    %66 = vector.broadcast %65 : vector<1x32xf32> to vector<8x32xf32>
    %67 = arith.addf %64, %66 : vector<8x32xf32>
    %68 = arith.addf %25, %67 : vector<8x32xf32>
    %69 = vector.extract_strided_slice %27 {offsets = [1, 0], sizes = [1, 32], strides = [1, 1]} : vector<6x32xf32> to vector<1x32xf32>
    %70 = vector.extract_strided_slice %27 {offsets = [2, 0], sizes = [1, 32], strides = [1, 1]} : vector<6x32xf32> to vector<1x32xf32>
    %cst_27 = arith.constant dense<0.000000e+00> : vector<8xf32>
    %71 = vector.multi_reduction <add>, %68, %cst_27 [1] : vector<8x32xf32> to vector<8xf32>
    %72 = vector.shape_cast %71 : vector<8xf32> to vector<8x1xf32>
    %cst_28 = arith.constant 3.200000e+01 : f32
    %73 = vector.broadcast %cst_28 : f32 to vector<8x1xf32>
    %74 = arith.divf %72, %73 : vector<8x1xf32>
    %75 = vector.broadcast %74 : vector<8x1xf32> to vector<8x32xf32>
    %76 = arith.subf %68, %75 : vector<8x32xf32>
    %77 = arith.mulf %76, %76 : vector<8x32xf32>
    %cst_29 = arith.constant dense<0.000000e+00> : vector<8xf32>
    %78 = vector.multi_reduction <add>, %77, %cst_29 [1] : vector<8x32xf32> to vector<8xf32>
    %79 = vector.shape_cast %78 : vector<8xf32> to vector<8x1xf32>
    %cst_30 = arith.constant 3.200000e+01 : f32
    %80 = vector.broadcast %cst_30 : f32 to vector<8x1xf32>
    %81 = arith.divf %79, %80 : vector<8x1xf32>
    %cst_31 = arith.constant 9.99999974E-6 : f32
    %82 = vector.broadcast %cst_31 : f32 to vector<8x1xf32>
    %83 = arith.addf %81, %82 : vector<8x1xf32>
    %84 = math.rsqrt %83 : vector<8x1xf32>
    %85 = vector.broadcast %84 : vector<8x1xf32> to vector<8x32xf32>
    %86 = arith.mulf %76, %85 : vector<8x32xf32>
    %87 = vector.broadcast %69 : vector<1x32xf32> to vector<8x32xf32>
    %88 = arith.mulf %86, %87 : vector<8x32xf32>
    %89 = vector.broadcast %70 : vector<1x32xf32> to vector<8x32xf32>
    %90 = arith.addf %88, %89 : vector<8x32xf32>
    %c0_32 = arith.constant 0 : index
    %c0_33 = arith.constant 0 : index
    %c0_34 = arith.constant 0 : index
    %91 = vector.load %arg7[%c0_32, %c0_33, %c0_34] : memref<2x32x128xbf16, #tpu.memory_space<vmem>>, vector<1x32x128xbf16>
    %92 = vector.shape_cast %91 : vector<1x32x128xbf16> to vector<32x128xbf16>
    %93 = arith.truncf %90 : vector<8x32xf32> to vector<8x32xbf16>
    %cst_35 = arith.constant dense<0.000000e+00> : vector<8x128xf32>
    %94 = tpu.matmul %93, %92, %cst_35 {dimension_numbers = #tpu.dot_dimension_numbers<[1], [0], [0], [1], [0, 0, 1, 1], [], []>} : vector<8x32xbf16>, vector<32x128xbf16>, vector<8x128xf32> -> vector<8x128xf32>
    %c0_36 = arith.constant 0 : index
    %c0_37 = arith.constant 0 : index
    %c0_38 = arith.constant 0 : index
    %95 = vector.load %arg8[%c0_36, %c0_37, %c0_38] : memref<2x1x128xf32, #tpu.memory_space<vmem>>, vector<1x1x128xf32>
    %96 = vector.shape_cast %95 : vector<1x1x128xf32> to vector<1x128xf32>
    %97 = vector.broadcast %96 : vector<1x128xf32> to vector<8x128xf32>
    %98 = arith.addf %94, %97 : vector<8x128xf32>
    %cst_39 = arith.constant 0.000000e+00 : f32
    %99 = vector.broadcast %cst_39 : f32 to vector<8x128xf32>
    %100 = arith.maximumf %98, %99 : vector<8x128xf32>
    %c0_40 = arith.constant 0 : index
    %c0_41 = arith.constant 0 : index
    %c0_42 = arith.constant 0 : index
    %101 = vector.load %arg9[%c0_40, %c0_41, %c0_42] : memref<2x128x32xbf16, #tpu.memory_space<vmem>>, vector<1x128x32xbf16>
    %102 = vector.shape_cast %101 : vector<1x128x32xbf16> to vector<128x32xbf16>
    %103 = arith.truncf %100 : vector<8x128xf32> to vector<8x128xbf16>
    %cst_43 = arith.constant dense<0.000000e+00> : vector<8x32xf32>
    %104 = tpu.matmul %103, %102, %cst_43 {dimension_numbers = #tpu.dot_dimension_numbers<[1], [0], [0], [1], [0, 0, 1, 1], [], []>} : vector<8x128xbf16>, vector<128x32xbf16>, vector<8x32xf32> -> vector<8x32xf32>
    %105 = vector.extract_strided_slice %27 {offsets = [5, 0], sizes = [1, 32], strides = [1, 1]} : vector<6x32xf32> to vector<1x32xf32>
    %106 = vector.broadcast %105 : vector<1x32xf32> to vector<8x32xf32>
    %107 = arith.addf %104, %106 : vector<8x32xf32>
    %108 = arith.addf %90, %107 : vector<8x32xf32>
    %109 = vector.extract_strided_slice %27 {offsets = [3, 0], sizes = [1, 32], strides = [1, 1]} : vector<6x32xf32> to vector<1x32xf32>
    %110 = vector.extract_strided_slice %27 {offsets = [4, 0], sizes = [1, 32], strides = [1, 1]} : vector<6x32xf32> to vector<1x32xf32>
    %cst_44 = arith.constant dense<0.000000e+00> : vector<8xf32>
    %111 = vector.multi_reduction <add>, %108, %cst_44 [1] : vector<8x32xf32> to vector<8xf32>
    %112 = vector.shape_cast %111 : vector<8xf32> to vector<8x1xf32>
    %cst_45 = arith.constant 3.200000e+01 : f32
    %113 = vector.broadcast %cst_45 : f32 to vector<8x1xf32>
    %114 = arith.divf %112, %113 : vector<8x1xf32>
    %115 = vector.broadcast %114 : vector<8x1xf32> to vector<8x32xf32>
    %116 = arith.subf %108, %115 : vector<8x32xf32>
    %117 = arith.mulf %116, %116 : vector<8x32xf32>
    %cst_46 = arith.constant dense<0.000000e+00> : vector<8xf32>
    %118 = vector.multi_reduction <add>, %117, %cst_46 [1] : vector<8x32xf32> to vector<8xf32>
    %119 = vector.shape_cast %118 : vector<8xf32> to vector<8x1xf32>
    %cst_47 = arith.constant 3.200000e+01 : f32
    %120 = vector.broadcast %cst_47 : f32 to vector<8x1xf32>
    %121 = arith.divf %119, %120 : vector<8x1xf32>
    %cst_48 = arith.constant 9.99999974E-6 : f32
    %122 = vector.broadcast %cst_48 : f32 to vector<8x1xf32>
    %123 = arith.addf %121, %122 : vector<8x1xf32>
    %124 = math.rsqrt %123 : vector<8x1xf32>
    %125 = vector.broadcast %124 : vector<8x1xf32> to vector<8x32xf32>
    %126 = arith.mulf %116, %125 : vector<8x32xf32>
    %127 = vector.broadcast %109 : vector<1x32xf32> to vector<8x32xf32>
    %128 = arith.mulf %126, %127 : vector<8x32xf32>
    %129 = vector.broadcast %110 : vector<1x32xf32> to vector<8x32xf32>
    %130 = arith.addf %128, %129 : vector<8x32xf32>
    %c1 = arith.constant 1 : index
    %c0_49 = arith.constant 0 : index
    %c0_50 = arith.constant 0 : index
    %131 = vector.load %arg10[%c1, %c0_49, %c0_50] : memref<2x6x32xf32, #tpu.memory_space<vmem>>, vector<1x6x32xf32>
    %132 = vector.shape_cast %131 : vector<1x6x32xf32> to vector<6x32xf32>
    %133 = vector.shape_cast %130 : vector<8x32xf32> to vector<1x8x32xf32>
    %134 = vector.broadcast %23 : vector<1x8x1xf32> to vector<1x8x32xf32>
    %135 = arith.mulf %133, %134 : vector<1x8x32xf32>
    %cst_51 = arith.constant dense<0.000000e+00> : vector<1x32xf32>
    %136 = vector.multi_reduction <add>, %135, %cst_51 [1] : vector<1x8x32xf32> to vector<1x32xf32>
    %c1_52 = arith.constant 1 : index
    %c0_53 = arith.constant 0 : index
    %c0_54 = arith.constant 0 : index
    %137 = vector.load %arg4[%c1_52, %c0_53, %c0_54] : memref<2x32x96xbf16, #tpu.memory_space<vmem>>, vector<1x32x96xbf16>
    %138 = vector.shape_cast %137 : vector<1x32x96xbf16> to vector<32x96xbf16>
    %139 = vector.extract_strided_slice %138 {offsets = [0, 32], sizes = [32, 64], strides = [1, 1]} : vector<32x96xbf16> to vector<32x64xbf16>
    %140 = arith.truncf %130 : vector<8x32xf32> to vector<8x32xbf16>
    %cst_55 = arith.constant dense<0.000000e+00> : vector<8x64xf32>
    %141 = tpu.matmul %140, %139, %cst_55 {dimension_numbers = #tpu.dot_dimension_numbers<[1], [0], [0], [1], [0, 0, 1, 1], [], []>} : vector<8x32xbf16>, vector<32x64xbf16>, vector<8x64xf32> -> vector<8x64xf32>
    %c1_56 = arith.constant 1 : index
    %c0_57 = arith.constant 0 : index
    %c0_58 = arith.constant 0 : index
    %142 = vector.load %arg5[%c1_56, %c0_57, %c0_58] : memref<2x1x96xf32, #tpu.memory_space<vmem>>, vector<1x1x96xf32>
    %143 = vector.shape_cast %142 : vector<1x1x96xf32> to vector<1x96xf32>
    %144 = vector.extract_strided_slice %143 {offsets = [0, 32], sizes = [1, 64], strides = [1, 1]} : vector<1x96xf32> to vector<1x64xf32>
    %145 = vector.broadcast %144 : vector<1x64xf32> to vector<8x64xf32>
    %146 = arith.addf %141, %145 : vector<8x64xf32>
    %147 = vector.extract_strided_slice %146 {offsets = [0, 0], sizes = [8, 32], strides = [1, 1]} : vector<8x64xf32> to vector<8x32xf32>
    %148 = vector.shape_cast %147 : vector<8x32xf32> to vector<1x8x32xf32>
    %149 = vector.extract_strided_slice %146 {offsets = [0, 32], sizes = [8, 32], strides = [1, 1]} : vector<8x64xf32> to vector<8x32xf32>
    %150 = vector.shape_cast %149 : vector<8x32xf32> to vector<1x8x32xf32>
    %151 = vector.extract_strided_slice %138 {offsets = [0, 0], sizes = [32, 32], strides = [1, 1]} : vector<32x96xbf16> to vector<32x32xbf16>
    %152 = arith.truncf %136 : vector<1x32xf32> to vector<1x32xbf16>
    %cst_59 = arith.constant dense<0.000000e+00> : vector<1x32xf32>
    %153 = tpu.matmul %152, %151, %cst_59 {dimension_numbers = #tpu.dot_dimension_numbers<[1], [0], [0], [1], [0, 0, 1, 1], [], []>} : vector<1x32xbf16>, vector<32x32xbf16>, vector<1x32xf32> -> vector<1x32xf32>
    %c1_60 = arith.constant 1 : index
    %c0_61 = arith.constant 0 : index
    %c0_62 = arith.constant 0 : index
    %154 = vector.load %arg5[%c1_60, %c0_61, %c0_62] : memref<2x1x96xf32, #tpu.memory_space<vmem>>, vector<1x1x96xf32>
    %155 = vector.shape_cast %154 : vector<1x1x96xf32> to vector<1x96xf32>
    %156 = vector.extract_strided_slice %155 {offsets = [0, 0], sizes = [1, 32], strides = [1, 1]} : vector<1x96xf32> to vector<1x32xf32>
    %157 = arith.addf %153, %156 : vector<1x32xf32>
    %158 = vector.shape_cast %157 : vector<1x32xf32> to vector<1x1x32xf32>
    %159 = vector.broadcast %158 : vector<1x1x32xf32> to vector<1x8x32xf32>
    %160 = arith.mulf %159, %148 : vector<1x8x32xf32>
    %cst_63 = arith.constant dense<0.000000e+00> : vector<1x8xf32>
    %161 = vector.multi_reduction <add>, %160, %cst_63 [2] : vector<1x8x32xf32> to vector<1x8xf32>
    %cst_64 = arith.constant -1.000000e+09 : f32
    %162 = vector.broadcast %cst_64 : f32 to vector<1x8xf32>
    %163 = arith.select %18, %161, %162 : vector<1x8xi1>, vector<1x8xf32>
    %cst_65 = arith.constant dense<0xFF800000> : vector<1xf32>
    %164 = vector.multi_reduction <maximumf>, %163, %cst_65 [1] : vector<1x8xf32> to vector<1xf32>
    %165 = vector.shape_cast %164 : vector<1xf32> to vector<1x1xf32>
    %166 = vector.broadcast %165 : vector<1x1xf32> to vector<1x8xf32>
    %167 = arith.subf %163, %166 : vector<1x8xf32>
    %168 = math.exp %167 : vector<1x8xf32>
    %cst_66 = arith.constant dense<0.000000e+00> : vector<1xf32>
    %169 = vector.multi_reduction <add>, %168, %cst_66 [1] : vector<1x8xf32> to vector<1xf32>
    %170 = vector.shape_cast %169 : vector<1xf32> to vector<1x1xf32>
    %171 = tpu.reciprocal %170 {approx = true} : vector<1x1xf32> -> vector<1x1xf32>
    %172 = vector.broadcast %171 : vector<1x1xf32> to vector<1x8xf32>
    %173 = arith.mulf %168, %172 : vector<1x8xf32>
    %174 = vector.shape_cast %173 : vector<1x8xf32> to vector<1x8x1xf32>
    %175 = vector.broadcast %174 : vector<1x8x1xf32> to vector<1x8x32xf32>
    %176 = arith.mulf %175, %150 : vector<1x8x32xf32>
    %cst_67 = arith.constant dense<0.000000e+00> : vector<1x32xf32>
    %177 = vector.multi_reduction <add>, %176, %cst_67 [1] : vector<1x8x32xf32> to vector<1x32xf32>
    %c1_68 = arith.constant 1 : index
    %c0_69 = arith.constant 0 : index
    %c0_70 = arith.constant 0 : index
    %178 = vector.load %arg6[%c1_68, %c0_69, %c0_70] : memref<2x32x32xbf16, #tpu.memory_space<vmem>>, vector<1x32x32xbf16>
    %179 = vector.shape_cast %178 : vector<1x32x32xbf16> to vector<32x32xbf16>
    %180 = arith.truncf %177 : vector<1x32xf32> to vector<1x32xbf16>
    %cst_71 = arith.constant dense<0.000000e+00> : vector<1x32xf32>
    %181 = tpu.matmul %180, %179, %cst_71 {dimension_numbers = #tpu.dot_dimension_numbers<[1], [0], [0], [1], [0, 0, 1, 1], [], []>} : vector<1x32xbf16>, vector<32x32xbf16>, vector<1x32xf32> -> vector<1x32xf32>
    %182 = vector.extract_strided_slice %132 {offsets = [0, 0], sizes = [1, 32], strides = [1, 1]} : vector<6x32xf32> to vector<1x32xf32>
    %183 = arith.addf %181, %182 : vector<1x32xf32>
    %184 = arith.addf %136, %183 : vector<1x32xf32>
    %185 = vector.extract_strided_slice %132 {offsets = [1, 0], sizes = [1, 32], strides = [1, 1]} : vector<6x32xf32> to vector<1x32xf32>
    %186 = vector.extract_strided_slice %132 {offsets = [2, 0], sizes = [1, 32], strides = [1, 1]} : vector<6x32xf32> to vector<1x32xf32>
    %cst_72 = arith.constant dense<0.000000e+00> : vector<1xf32>
    %187 = vector.multi_reduction <add>, %184, %cst_72 [1] : vector<1x32xf32> to vector<1xf32>
    %188 = vector.shape_cast %187 : vector<1xf32> to vector<1x1xf32>
    %cst_73 = arith.constant 3.200000e+01 : f32
    %189 = vector.broadcast %cst_73 : f32 to vector<1x1xf32>
    %190 = arith.divf %188, %189 : vector<1x1xf32>
    %191 = vector.broadcast %190 : vector<1x1xf32> to vector<1x32xf32>
    %192 = arith.subf %184, %191 : vector<1x32xf32>
    %193 = arith.mulf %192, %192 : vector<1x32xf32>
    %cst_74 = arith.constant dense<0.000000e+00> : vector<1xf32>
    %194 = vector.multi_reduction <add>, %193, %cst_74 [1] : vector<1x32xf32> to vector<1xf32>
    %195 = vector.shape_cast %194 : vector<1xf32> to vector<1x1xf32>
    %cst_75 = arith.constant 3.200000e+01 : f32
    %196 = vector.broadcast %cst_75 : f32 to vector<1x1xf32>
    %197 = arith.divf %195, %196 : vector<1x1xf32>
    %cst_76 = arith.constant 9.99999974E-6 : f32
    %198 = vector.broadcast %cst_76 : f32 to vector<1x1xf32>
    %199 = arith.addf %197, %198 : vector<1x1xf32>
    %200 = math.rsqrt %199 : vector<1x1xf32>
    %201 = vector.broadcast %200 : vector<1x1xf32> to vector<1x32xf32>
    %202 = arith.mulf %192, %201 : vector<1x32xf32>
    %203 = arith.mulf %202, %185 : vector<1x32xf32>
    %204 = arith.addf %203, %186 : vector<1x32xf32>
    %c1_77 = arith.constant 1 : index
    %c0_78 = arith.constant 0 : index
    %c0_79 = arith.constant 0 : index
    %205 = vector.load %arg7[%c1_77, %c0_78, %c0_79] : memref<2x32x128xbf16, #tpu.memory_space<vmem>>, vector<1x32x128xbf16>
    %206 = vector.shape_cast %205 : vector<1x32x128xbf16> to vector<32x128xbf16>
    %207 = arith.truncf %204 : vector<1x32xf32> to vector<1x32xbf16>
    %cst_80 = arith.constant dense<0.000000e+00> : vector<1x128xf32>
    %208 = tpu.matmul %207, %206, %cst_80 {dimension_numbers = #tpu.dot_dimension_numbers<[1], [0], [0], [1], [0, 0, 1, 1], [], []>} : vector<1x32xbf16>, vector<32x128xbf16>, vector<1x128xf32> -> vector<1x128xf32>
    %c1_81 = arith.constant 1 : index
    %c0_82 = arith.constant 0 : index
    %c0_83 = arith.constant 0 : index
    %209 = vector.load %arg8[%c1_81, %c0_82, %c0_83] : memref<2x1x128xf32, #tpu.memory_space<vmem>>, vector<1x1x128xf32>
    %210 = vector.shape_cast %209 : vector<1x1x128xf32> to vector<1x128xf32>
    %211 = arith.addf %208, %210 : vector<1x128xf32>
    %cst_84 = arith.constant 0.000000e+00 : f32
    %212 = vector.broadcast %cst_84 : f32 to vector<1x128xf32>
    %213 = arith.maximumf %211, %212 : vector<1x128xf32>
    %c1_85 = arith.constant 1 : index
    %c0_86 = arith.constant 0 : index
    %c0_87 = arith.constant 0 : index
    %214 = vector.load %arg9[%c1_85, %c0_86, %c0_87] : memref<2x128x32xbf16, #tpu.memory_space<vmem>>, vector<1x128x32xbf16>
    %215 = vector.shape_cast %214 : vector<1x128x32xbf16> to vector<128x32xbf16>
    %216 = arith.truncf %213 : vector<1x128xf32> to vector<1x128xbf16>
    %cst_88 = arith.constant dense<0.000000e+00> : vector<1x32xf32>
    %217 = tpu.matmul %216, %215, %cst_88 {dimension_numbers = #tpu.dot_dimension_numbers<[1], [0], [0], [1], [0, 0, 1, 1], [], []>} : vector<1x128xbf16>, vector<128x32xbf16>, vector<1x32xf32> -> vector<1x32xf32>
    %218 = vector.extract_strided_slice %132 {offsets = [5, 0], sizes = [1, 32], strides = [1, 1]} : vector<6x32xf32> to vector<1x32xf32>
    %219 = arith.addf %217, %218 : vector<1x32xf32>
    %220 = arith.addf %204, %219 : vector<1x32xf32>
    %221 = vector.extract_strided_slice %132 {offsets = [3, 0], sizes = [1, 32], strides = [1, 1]} : vector<6x32xf32> to vector<1x32xf32>
    %222 = vector.extract_strided_slice %132 {offsets = [4, 0], sizes = [1, 32], strides = [1, 1]} : vector<6x32xf32> to vector<1x32xf32>
    %cst_89 = arith.constant dense<0.000000e+00> : vector<1xf32>
    %223 = vector.multi_reduction <add>, %220, %cst_89 [1] : vector<1x32xf32> to vector<1xf32>
    %224 = vector.shape_cast %223 : vector<1xf32> to vector<1x1xf32>
    %cst_90 = arith.constant 3.200000e+01 : f32
    %225 = vector.broadcast %cst_90 : f32 to vector<1x1xf32>
    %226 = arith.divf %224, %225 : vector<1x1xf32>
    %227 = vector.broadcast %226 : vector<1x1xf32> to vector<1x32xf32>
    %228 = arith.subf %220, %227 : vector<1x32xf32>
    %229 = arith.mulf %228, %228 : vector<1x32xf32>
    %cst_91 = arith.constant dense<0.000000e+00> : vector<1xf32>
    %230 = vector.multi_reduction <add>, %229, %cst_91 [1] : vector<1x32xf32> to vector<1xf32>
    %231 = vector.shape_cast %230 : vector<1xf32> to vector<1x1xf32>
    %cst_92 = arith.constant 3.200000e+01 : f32
    %232 = vector.broadcast %cst_92 : f32 to vector<1x1xf32>
    %233 = arith.divf %231, %232 : vector<1x1xf32>
    %cst_93 = arith.constant 9.99999974E-6 : f32
    %234 = vector.broadcast %cst_93 : f32 to vector<1x1xf32>
    %235 = arith.addf %233, %234 : vector<1x1xf32>
    %236 = math.rsqrt %235 : vector<1x1xf32>
    %237 = vector.broadcast %236 : vector<1x1xf32> to vector<1x32xf32>
    %238 = arith.mulf %228, %237 : vector<1x32xf32>
    %239 = arith.mulf %238, %221 : vector<1x32xf32>
    %240 = arith.addf %239, %222 : vector<1x32xf32>
    %241 = vector.shape_cast %240 : vector<1x32xf32> to vector<1x1x32xf32>
    %c0_94 = arith.constant 0 : index
    %c0_95 = arith.constant 0 : index
    %c0_96 = arith.constant 0 : index
    %242 = vector.load %arg11[%c0_94, %c0_95, %c0_96] : memref<1x1x32xf32, #tpu.memory_space<vmem>>, vector<1x1x32xf32>
    tpu.vector_store %arg11[%c0_94, %c0_95, %c0_96], %241 {strides = array<i32>} : memref<1x1x32xf32, #tpu.memory_space<vmem>>, vector<1x1x32xf32>,
    return
  }
  func.func @transform_0(%arg0: i32) -> (i32, i32, i32) {
    %c0_i32 = arith.constant 0 : i32
    %c0_i32_0 = arith.constant 0 : i32
    %c0_i32_1 = arith.constant 0 : i32
    return %arg0, %c0_i32, %c0_i32_0 : i32, i32, i32
  }
  func.func @transform_1(%arg0: i32) -> (i32, i32, i32) {
    %c0_i32 = arith.constant 0 : i32
    %c0_i32_0 = arith.constant 0 : i32
    %c0_i32_1 = arith.constant 0 : i32
    return %arg0, %c0_i32, %c0_i32_0 : i32, i32, i32
  }
  func.func @transform_2(%arg0: i32) -> (i32, i32, i32) {
    %c0_i32 = arith.constant 0 : i32
    %c0_i32_0 = arith.constant 0 : i32
    %c0_i32_1 = arith.constant 0 : i32
    return %arg0, %c0_i32, %c0_i32_0 : i32, i32, i32
  }
  func.func @transform_3(%arg0: i32) -> (i32, i32, i32) {
    %c0_i32 = arith.constant 0 : i32
    %c0_i32_0 = arith.constant 0 : i32
    %c0_i32_1 = arith.constant 0 : i32
    %c0_i32_2 = arith.constant 0 : i32
    return %c0_i32, %c0_i32_0, %c0_i32_1 : i32, i32, i32
  }
  func.func @transform_4(%arg0: i32) -> (i32, i32, i32) {
    %c0_i32 = arith.constant 0 : i32
    %c0_i32_0 = arith.constant 0 : i32
    %c0_i32_1 = arith.constant 0 : i32
    %c0_i32_2 = arith.constant 0 : i32
    return %c0_i32, %c0_i32_0, %c0_i32_1 : i32, i32, i32
  }
  func.func @transform_5(%arg0: i32) -> (i32, i32, i32) {
    %c0_i32 = arith.constant 0 : i32
    %c0_i32_0 = arith.constant 0 : i32
    %c0_i32_1 = arith.constant 0 : i32
    %c0_i32_2 = arith.constant 0 : i32
    return %c0_i32, %c0_i32_0, %c0_i32_1 : i32, i32, i32
  }
  func.func @transform_6(%arg0: i32) -> (i32, i32, i32) {
    %c0_i32 = arith.constant 0 : i32
    %c0_i32_0 = arith.constant 0 : i32
    %c0_i32_1 = arith.constant 0 : i32
    %c0_i32_2 = arith.constant 0 : i32
    return %c0_i32, %c0_i32_0, %c0_i32_1 : i32, i32, i32
  }
  func.func @transform_7(%arg0: i32) -> (i32, i32, i32) {
    %c0_i32 = arith.constant 0 : i32
    %c0_i32_0 = arith.constant 0 : i32
    %c0_i32_1 = arith.constant 0 : i32
    %c0_i32_2 = arith.constant 0 : i32
    return %c0_i32, %c0_i32_0, %c0_i32_1 : i32, i32, i32
  }
  func.func @transform_8(%arg0: i32) -> (i32, i32, i32) {
    %c0_i32 = arith.constant 0 : i32
    %c0_i32_0 = arith.constant 0 : i32
    %c0_i32_1 = arith.constant 0 : i32
    %c0_i32_2 = arith.constant 0 : i32
    return %c0_i32, %c0_i32_0, %c0_i32_1 : i32, i32, i32
  }
  func.func @transform_9(%arg0: i32) -> (i32, i32, i32) {
    %c0_i32 = arith.constant 0 : i32
    %c0_i32_0 = arith.constant 0 : i32
    %c0_i32_1 = arith.constant 0 : i32
    %c0_i32_2 = arith.constant 0 : i32
    return %c0_i32, %c0_i32_0, %c0_i32_1 : i32, i32, i32
  }
  func.func @transform_10(%arg0: i32) -> (i32, i32, i32) {
    %c0_i32 = arith.constant 0 : i32
    %c0_i32_0 = arith.constant 0 : i32
    %c0_i32_1 = arith.constant 0 : i32
    return %arg0, %c0_i32, %c0_i32_0 : i32, i32, i32
  }
}

</mosaic_0001>

<llo_original>
// kernel: model_forward.1
$region0: #{model_forward.1}
  #allocation0 [shape = 'u32[]', space=smem, size = 0x4, offset = 0x4, fixed_abs, tag = 'smem constant byte address 0x4 - core index']
  #allocation1 [shape = 'u32[144,128]{1,0:T(1,128)}', space=vmem, size = 0x12000, scoped, tag = 'internal scratch']
  %s0 = inlined_call_operand.vmem [shape: f32[2,8,32], index: 0, kind: input, shape index: {}]
  %s1 = inlined_call_operand.vmem [shape: s32[2,1,8], index: 1, kind: input, shape index: {}]
  %s2 = inlined_call_operand.vmem [shape: s32[2,1,1], index: 2, kind: input, shape index: {}]
  %s3 = inlined_call_operand.vmem [shape: bf16[2,32,96], index: 3, kind: input, shape index: {}]
  %s4 = inlined_call_operand.vmem [shape: f32[2,1,96], index: 4, kind: input, shape index: {}]
  %s5 = inlined_call_operand.vmem [shape: bf16[2,32,32], index: 5, kind: input, shape index: {}]
  %s6 = inlined_call_operand.vmem [shape: bf16[2,32,128], index: 6, kind: input, shape index: {}]
  %s7 = inlined_call_operand.vmem [shape: f32[2,1,128], index: 7, kind: input, shape index: {}]
  %s8 = inlined_call_operand.vmem [shape: bf16[2,128,32], index: 8, kind: input, shape index: {}]
  %s9 = inlined_call_operand.vmem [shape: f32[2,6,32], index: 9, kind: input, shape index: {}]
  %s10 = inlined_call_operand.hbm [shape: f32[2,1,32], index: 10, kind: output, shape index: {}]
  %s11 = sld [smem:[#allocation0]]
  $region73: #{model_forward.1} parent=0
    _
  %s13 = ssub.s32 1, %s11
  %s14 = scalar_select 0, %s13, %s11
  $region1: #{model_forward.1} parent=0
    #allocation2 [shape = 'u8[1024]{0}', space=vmem, size = 0x400, scoped, tag = 'output window, operand 0']
    #allocation3 [shape = 's32[2]{0}', space=sflag, size = 0x8, scoped, tag = 'scoped memory for model_forward.1']
    %15 = vsyncpa [#allocation3], 0
    %s16 = scalar_lea.sflag [#allocation3], 1
    %17 = vsyncpa %s16, 0
    loop: start=0, step=1, limit=4
    $region2: #{model_forward.1} parent=1 // loop_pre_header
      _
    $region3: #{model_forward.1} parent=1 // loop_header
      %s19 = sphi 0, %s23
      %p20 = scmp.ge.s32.totalorder %s19, 4
      %s29 = sphi 0, %s31
      %s32 = sphi 0, %s29
      %s33 = sphi 0, %s32
      %s49 = sphi 0, %s33
      %s55 = sphi 0, %s57
      %s58 = sphi 0, %s55
      %s59 = sphi 0, %s58
      %s75 = sphi 0, %s59
      %s81 = sphi 0, %s83
      %s84 = sphi 0, %s81
      %s85 = sphi 0, %s84
      %s101 = sphi 0, %s85
      %s105 = sphi 0, %s105
      %s107 = sphi 0, %s105
      %s108 = sphi 0, %s107
      %s122 = sphi 0, %s108
      %s126 = sphi 0, %s126
      %s128 = sphi 0, %s126
      %s129 = sphi 0, %s128
      %s143 = sphi 0, %s129
      %s147 = sphi 0, %s147
      %s149 = sphi 0, %s147
      %s150 = sphi 0, %s149
      %s164 = sphi 0, %s150
      %s168 = sphi 0, %s168
      %s170 = sphi 0, %s168
      %s171 = sphi 0, %s170
      %s185 = sphi 0, %s171
      %s189 = sphi 0, %s189
      %s191 = sphi 0, %s189
      %s192 = sphi 0, %s191
      %s206 = sphi 0, %s192
      %s210 = sphi 0, %s210
      %s212 = sphi 0, %s210
      %s213 = sphi 0, %s212
      %s227 = sphi 0, %s213
      %s231 = sphi 0, %s231
      %s233 = sphi 0, %s231
      %s234 = sphi 0, %s233
      %s248 = sphi 0, %s234
      %s254 = sphi 0, %s256
      %s257 = sphi 0, %s254
      %s258 = sphi 0, %s257
      %s274 = sphi 0, %s258
    $region4: #{model_forward.1} parent=1 // loop_header_branch
      %22 = sbr.rel (%p20) target = $region8
    $region5: #{model_forward.1} parent=1 // loop_body
      %s24 = ssub.s32 %s19, 1
      %s25 = ssub.s32 %s19, 2
      %s26 = sadd.s32 %s19, 1
      %s27 = ssub.s32 %s19, %s26
      %p28 = scmp.eq.s32.totalorder %s27, 0
      %s30 = sadd.s32 %s29, 1
      %s31 = scalar_select %p28, %s29, %s30
      %p34 = pneg %p28
      %p35 = scmp.eq.s32.totalorder %s19, 1
      %p36 = por %p34, %p35
      %p37 = scmp.ne.s32.totalorder %s29, %s32
      %p38 = scmp.eq.s32.totalorder %s19, 0
      %p39 = por %p37, %p38
      %p40 = scmp.ne.s32.totalorder %s29, %s32
      %p41 = scmp.eq.s32.totalorder %s24, 1
      %p42 = por %p40, %p41
      %p43 = scmp.ne.s32.totalorder %s32, %s33
      %p44 = scmp.eq.s32.totalorder %s24, 0
      %p45 = por %p43, %p44
      %p46 = scmp.ne.s32.totalorder %s32, %s33
      %p47 = scmp.eq.s32.totalorder %s25, 1
      %p48 = por %p46, %p47
      %p50 = scmp.ne.s32.totalorder %s33, %s49
      %p51 = scmp.eq.s32.totalorder %s25, 0
      %p52 = por %p50, %p51
      %s53 = ssub.s32 %s19, %s26
      %p54 = scmp.eq.s32.totalorder %s53, 0
      %s56 = sadd.s32 %s55, 1
      %s57 = scalar_select %p54, %s55, %s56
      %p60 = pneg %p54
      %p61 = scmp.eq.s32.totalorder %s19, 1
      %p62 = por %p60, %p61
      %p63 = scmp.ne.s32.totalorder %s55, %s58
      %p64 = scmp.eq.s32.totalorder %s19, 0
      %p65 = por %p63, %p64
      %p66 = scmp.ne.s32.totalorder %s55, %s58
      %p67 = scmp.eq.s32.totalorder %s24, 1
      %p68 = por %p66, %p67
      %p69 = scmp.ne.s32.totalorder %s58, %s59
      %p70 = scmp.eq.s32.totalorder %s24, 0
      %p71 = por %p69, %p70
      %p72 = scmp.ne.s32.totalorder %s58, %s59
      %p73 = scmp.eq.s32.totalorder %s25, 1
      %p74 = por %p72, %p73
      %p76 = scmp.ne.s32.totalorder %s59, %s75
      %p77 = scmp.eq.s32.totalorder %s25, 0
      %p78 = por %p76, %p77
      %s79 = ssub.s32 %s19, %s26
      %p80 = scmp.eq.s32.totalorder %s79, 0
      %s82 = sadd.s32 %s81, 1
      %s83 = scalar_select %p80, %s81, %s82
      %p86 = pneg %p80
      %p87 = scmp.eq.s32.totalorder %s19, 1
      %p88 = por %p86, %p87
      %p89 = scmp.ne.s32.totalorder %s81, %s84
      %p90 = scmp.eq.s32.totalorder %s19, 0
      %p91 = por %p89, %p90
      %p92 = scmp.ne.s32.totalorder %s81, %s84
      %p93 = scmp.eq.s32.totalorder %s24, 1
      %p94 = por %p92, %p93
      %p95 = scmp.ne.s32.totalorder %s84, %s85
      %p96 = scmp.eq.s32.totalorder %s24, 0
      %p97 = por %p95, %p96
      %p98 = scmp.ne.s32.totalorder %s84, %s85
      %p99 = scmp.eq.s32.totalorder %s25, 1
      %p100 = por %p98, %p99
      %p102 = scmp.ne.s32.totalorder %s85, %s101
      %p103 = scmp.eq.s32.totalorder %s25, 0
      %p104 = por %p102, %p103
      %s106 = sadd.s32 %s105, 1
      %p109 = scmp.eq.s32.totalorder %s19, 1
      %p110 = scmp.ne.s32.totalorder %s105, %s107
      %p111 = scmp.eq.s32.totalorder %s19, 0
      %p112 = por %p110, %p111
      %p113 = scmp.ne.s32.totalorder %s105, %s107
      %p114 = scmp.eq.s32.totalorder %s24, 1
      %p115 = por %p113, %p114
      %p116 = scmp.ne.s32.totalorder %s107, %s108
      %p117 = scmp.eq.s32.totalorder %s24, 0
      %p118 = por %p116, %p117
      %p119 = scmp.ne.s32.totalorder %s107, %s108
      %p120 = scmp.eq.s32.totalorder %s25, 1
      %p121 = por %p119, %p120
      %p123 = scmp.ne.s32.totalorder %s108, %s122
      %p124 = scmp.eq.s32.totalorder %s25, 0
      %p125 = por %p123, %p124
      %s127 = sadd.s32 %s126, 1
      %p130 = scmp.eq.s32.totalorder %s19, 1
      %p131 = scmp.ne.s32.totalorder %s126, %s128
      %p132 = scmp.eq.s32.totalorder %s19, 0
      %p133 = por %p131, %p132
      %p134 = scmp.ne.s32.totalorder %s126, %s128
      %p135 = scmp.eq.s32.totalorder %s24, 1
      %p136 = por %p134, %p135
      %p137 = scmp.ne.s32.totalorder %s128, %s129
      %p138 = scmp.eq.s32.totalorder %s24, 0
      %p139 = por %p137, %p138
      %p140 = scmp.ne.s32.totalorder %s128, %s129
      %p141 = scmp.eq.s32.totalorder %s25, 1
      %p142 = por %p140, %p141
      %p144 = scmp.ne.s32.totalorder %s129, %s143
      %p145 = scmp.eq.s32.totalorder %s25, 0
      %p146 = por %p144, %p145
      %s148 = sadd.s32 %s147, 1
      %p151 = scmp.eq.s32.totalorder %s19, 1
      %p152 = scmp.ne.s32.totalorder %s147, %s149
      %p153 = scmp.eq.s32.totalorder %s19, 0
      %p154 = por %p152, %p153
      %p155 = scmp.ne.s32.totalorder %s147, %s149
      %p156 = scmp.eq.s32.totalorder %s24, 1
      %p157 = por %p155, %p156
      %p158 = scmp.ne.s32.totalorder %s149, %s150
      %p159 = scmp.eq.s32.totalorder %s24, 0
      %p160 = por %p158, %p159
      %p161 = scmp.ne.s32.totalorder %s149, %s150
      %p162 = scmp.eq.s32.totalorder %s25, 1
      %p163 = por %p161, %p162
      %p165 = scmp.ne.s32.totalorder %s150, %s164
      %p166 = scmp.eq.s32.totalorder %s25, 0
      %p167 = por %p165, %p166
      %s169 = sadd.s32 %s168, 1
      %p172 = scmp.eq.s32.totalorder %s19, 1
      %p173 = scmp.ne.s32.totalorder %s168, %s170
      %p174 = scmp.eq.s32.totalorder %s19, 0
      %p175 = por %p173, %p174
      %p176 = scmp.ne.s32.totalorder %s168, %s170
      %p177 = scmp.eq.s32.totalorder %s24, 1
      %p178 = por %p176, %p177
      %p179 = scmp.ne.s32.totalorder %s170, %s171
      %p180 = scmp.eq.s32.totalorder %s24, 0
      %p181 = por %p179, %p180
      %p182 = scmp.ne.s32.totalorder %s170, %s171
      %p183 = scmp.eq.s32.totalorder %s25, 1
      %p184 = por %p182, %p183
      %p186 = scmp.ne.s32.totalorder %s171, %s185
      %p187 = scmp.eq.s32.totalorder %s25, 0
      %p188 = por %p186, %p187
      %s190 = sadd.s32 %s189, 1
      %p193 = scmp.eq.s32.totalorder %s19, 1
      %p194 = scmp.ne.s32.totalorder %s189, %s191
      %p195 = scmp.eq.s32.totalorder %s19, 0
      %p196 = por %p194, %p195
      %p197 = scmp.ne.s32.totalorder %s189, %s191
      %p198 = scmp.eq.s32.totalorder %s24, 1
      %p199 = por %p197, %p198
      %p200 = scmp.ne.s32.totalorder %s191, %s192
      %p201 = scmp.eq.s32.totalorder %s24, 0
      %p202 = por %p200, %p201
      %p203 = scmp.ne.s32.totalorder %s191, %s192
      %p204 = scmp.eq.s32.totalorder %s25, 1
      %p205 = por %p203, %p204
      %p207 = scmp.ne.s32.totalorder %s192, %s206
      %p208 = scmp.eq.s32.totalorder %s25, 0
      %p209 = por %p207, %p208
      %s211 = sadd.s32 %s210, 1
      %p214 = scmp.eq.s32.totalorder %s19, 1
      %p215 = scmp.ne.s32.totalorder %s210, %s212
      %p216 = scmp.eq.s32.totalorder %s19, 0
      %p217 = por %p215, %p216
      %p218 = scmp.ne.s32.totalorder %s210, %s212
      %p219 = scmp.eq.s32.totalorder %s24, 1
      %p220 = por %p218, %p219
      %p221 = scmp.ne.s32.totalorder %s212, %s213
      %p222 = scmp.eq.s32.totalorder %s24, 0
      %p223 = por %p221, %p222
      %p224 = scmp.ne.s32.totalorder %s212, %s213
      %p225 = scmp.eq.s32.totalorder %s25, 1
      %p226 = por %p224, %p225
      %p228 = scmp.ne.s32.totalorder %s213, %s227
      %p229 = scmp.eq.s32.totalorder %s25, 0
      %p230 = por %p228, %p229
      %s232 = sadd.s32 %s231, 1
      %p235 = scmp.eq.s32.totalorder %s19, 1
      %p236 = scmp.ne.s32.totalorder %s231, %s233
      %p237 = scmp.eq.s32.totalorder %s19, 0
      %p238 = por %p236, %p237
      %p239 = scmp.ne.s32.totalorder %s231, %s233
      %p240 = scmp.eq.s32.totalorder %s24, 1
      %p241 = por %p239, %p240
      %p242 = scmp.ne.s32.totalorder %s233, %s234
      %p243 = scmp.eq.s32.totalorder %s24, 0
      %p244 = por %p242, %p243
      %p245 = scmp.ne.s32.totalorder %s233, %s234
      %p246 = scmp.eq.s32.totalorder %s25, 1
      %p247 = por %p245, %p246
      %p249 = scmp.ne.s32.totalorder %s234, %s248
      %p250 = scmp.eq.s32.totalorder %s25, 0
      %p251 = por %p249, %p250
      %s252 = ssub.s32 %s19, %s26
      %p253 = scmp.eq.s32.totalorder %s252, 0
      %s255 = sadd.s32 %s254, 1
      %s256 = scalar_select %p253, %s254, %s255
      %p259 = pneg %p253
      %p260 = scmp.eq.s32.totalorder %s19, 1
      %p261 = por %p259, %p260
      %p262 = scmp.ne.s32.totalorder %s254, %s257
      %p263 = scmp.eq.s32.totalorder %s19, 0
      %p264 = por %p262, %p263
      %p265 = scmp.ne.s32.totalorder %s254, %s257
      %p266 = scmp.eq.s32.totalorder %s24, 1
      %p267 = por %p265, %p266
      %p268 = scmp.ne.s32.totalorder %s257, %s258
      %p269 = scmp.eq.s32.totalorder %s24, 0
      %p270 = por %p268, %p269
      %p271 = scmp.ne.s32.totalorder %s257, %s258
      %p272 = scmp.eq.s32.totalorder %s25, 1
      %p273 = por %p271, %p272
      %p275 = scmp.ne.s32.totalorder %s258, %s274
      %p276 = scmp.eq.s32.totalorder %s25, 0
      %p277 = por %p275, %p276
      %p278 = scmp.le.s32.totalorder 1, %s19
      %p279 = scmp.lt.s32.totalorder %s19, 3
      %p280 = pnand %p278, %p279
      %p281 = pneg %p280
      // Predicated region
      $region9: #{model_forward.1} parent=5 // pred_check
        _
      $region10: #{model_forward.1} parent=5 // pred_check_branch
        %283 = sbr.rel (%p280) target = $region12
      $region11: #{model_forward.1} parent=5 // pred_region
        %s284 = ssub.s32 %s19, 1
        // Predicated region
        $region13: #{model_forward.1} parent=11 // pred_check
          %p285 = pneg %p118
        $region14: #{model_forward.1} parent=11 // pred_check_branch
          %287 = sbr.rel (%p285) target = $region16
        $region15: #{model_forward.1} parent=11 // pred_region
          _
        $region16: #{model_forward.1} parent=11 // pred_fallthru
          _
        // Predicated region
        $region17: #{model_forward.1} parent=11 // pred_check
          %p288 = pneg %p139
        $region18: #{model_forward.1} parent=11 // pred_check_branch
          %290 = sbr.rel (%p288) target = $region20
        $region19: #{model_forward.1} parent=11 // pred_region
          _
        $region20: #{model_forward.1} parent=11 // pred_fallthru
          _
        // Predicated region
        $region21: #{model_forward.1} parent=11 // pred_check
          %p291 = pneg %p160
        $region22: #{model_forward.1} parent=11 // pred_check_branch
          %293 = sbr.rel (%p291) target = $region24
        $region23: #{model_forward.1} parent=11 // pred_region
          _
        $region24: #{model_forward.1} parent=11 // pred_fallthru
          _
        // Predicated region
        $region25: #{model_forward.1} parent=11 // pred_check
          %p294 = pneg %p181
        $region26: #{model_forward.1} parent=11 // pred_check_branch
          %296 = sbr.rel (%p294) target = $region28
        $region27: #{model_forward.1} parent=11 // pred_region
          _
        $region28: #{model_forward.1} parent=11 // pred_fallthru
          _
        // Predicated region
        $region29: #{model_forward.1} parent=11 // pred_check
          %p297 = pneg %p202
        $region30: #{model_forward.1} parent=11 // pred_check_branch
          %299 = sbr.rel (%p297) target = $region32
        $region31: #{model_forward.1} parent=11 // pred_region
          _
        $region32: #{model_forward.1} parent=11 // pred_fallthru
          _
        // Predicated region
        $region33: #{model_forward.1} parent=11 // pred_check
          %p300 = pneg %p223
        $region34: #{model_forward.1} parent=11 // pred_check_branch
          %302 = sbr.rel (%p300) target = $region36
        $region35: #{model_forward.1} parent=11 // pred_region
          _
        $region36: #{model_forward.1} parent=11 // pred_fallthru
          _
        // Predicated region
        $region37: #{model_forward.1} parent=11 // pred_check
          %p303 = pneg %p244
        $region38: #{model_forward.1} parent=11 // pred_check_branch
          %305 = sbr.rel (%p303) target = $region40
        $region39: #{model_forward.1} parent=11 // pred_region
          _
        $region40: #{model_forward.1} parent=11 // pred_fallthru
          _
      $region12: #{model_forward.1} parent=5 // pred_fallthru
        _
      %p306 = scmp.lt.s32.totalorder %s19, 2
      // Predicated region
      $region41: #{model_forward.1} parent=5 // pred_check
        %p307 = pneg %p306
      $region42: #{model_forward.1} parent=5 // pred_check_branch
        %309 = sbr.rel (%p307) target = $region44
      $region43: #{model_forward.1} parent=5 // pred_region
        // Predicated region
        $region45: #{model_forward.1} parent=43 // pred_check
          %p310 = pneg %p39
        $region46: #{model_forward.1} parent=43 // pred_check_branch
          %312 = sbr.rel (%p310) target = $region48
        $region47: #{model_forward.1} parent=43 // pred_region
          %p313 = scmp.lt.s32.totalorder %s19, 1
          %s314 = scalar_select %p313, %s19, 1
          %s315 = smul.addr %s314, 8
          %s316 = scalar_lea.vmem %s0, %s315
        $region48: #{model_forward.1} parent=43 // pred_fallthru
          _
        // Predicated region
        $region49: #{model_forward.1} parent=43 // pred_check
          %p317 = pneg %p65
        $region50: #{model_forward.1} parent=43 // pred_check_branch
          %319 = sbr.rel (%p317) target = $region52
        $region51: #{model_forward.1} parent=43 // pred_region
          %p320 = scmp.lt.s32.totalorder %s19, 1
          %s321 = scalar_select %p320, %s19, 1
          %s322 = scalar_lea.vmem %s1, %s321
        $region52: #{model_forward.1} parent=43 // pred_fallthru
          _
        // Predicated region
        $region53: #{model_forward.1} parent=43 // pred_check
          %p323 = pneg %p91
        $region54: #{model_forward.1} parent=43 // pred_check_branch
          %325 = sbr.rel (%p323) target = $region56
        $region55: #{model_forward.1} parent=43 // pred_region
          %p326 = scmp.lt.s32.totalorder %s19, 1
          %s327 = scalar_select %p326, %s19, 1
          %s328 = scalar_lea.vmem %s2, %s327
        $region56: #{model_forward.1} parent=43 // pred_fallthru
          _
      $region44: #{model_forward.1} parent=5 // pred_fallthru
        _
      %p329 = scmp.le.s32.totalorder 1, %s19
      %p330 = scmp.lt.s32.totalorder %s19, 3
      %p331 = pnand %p329, %p330
      %p332 = pneg %p331
      // Predicated region
      $region57: #{model_forward.1} parent=5 // pred_check
        _
      $region58: #{model_forward.1} parent=5 // pred_check_branch
        %334 = sbr.rel (%p331) target = $region60
      $region59: #{model_forward.1} parent=5 // pred_region
        %s335 = ssub.s32 %s19, 1
        %p336 = scmp.lt.s32.totalorder %s24, 1
        %s337 = scalar_select %p336, %s24, 1
        %s338 = smul.addr %s337, 8
        %s339 = scalar_lea.vmem %s0, %s338
        %p340 = pneg %p45
        %p341 = pneg %p42
        %p342 = scmp.lt.s32.totalorder %s24, 1
        %s343 = scalar_select %p342, %s24, 1
        %s344 = scalar_lea.vmem %s1, %s343
        %p345 = pneg %p71
        %p346 = pneg %p68
        %p347 = scmp.lt.s32.totalorder %s24, 1
        %s348 = scalar_select %p347, %s24, 1
        %s349 = scalar_lea.vmem %s2, %s348
        %p350 = pneg %p97
        %p351 = pneg %p94
        %p352 = pneg %p118
        %p353 = pneg %p115
        %p354 = pneg %p139
        %p355 = pneg %p136
        %p356 = pneg %p160
        %p357 = pneg %p157
        %p358 = pneg %p181
        %p359 = pneg %p178
        %p360 = pneg %p202
        %p361 = pneg %p199
        %p362 = pneg %p223
        %p363 = pneg %p220
        %p364 = pneg %p244
        %p365 = pneg %p241
        %p366 = pneg %p270
        %p367 = pneg %p267
        %s368 = sand.u32 %s257, 1
        %s369 = scalar_lea.sflag [#allocation3], %s368
        %s370 = sand.u32 %s257, 1
        %s371 = scalar_lea.vmem [#allocation2], %s370
        %p372 = scmp.lt.s32.totalorder %s24, 1
        %s373 = scalar_select %p372, %s24, 1
        %s374 = smul.addr %s373, 8
        %s375 = scalar_lea.vmem %s0, %s374
        %p376 = scmp.lt.s32.totalorder %s24, 1
        %s377 = scalar_select %p376, %s24, 1
        %s378 = scalar_lea.vmem %s1, %s377
        %p379 = scmp.lt.s32.totalorder %s24, 1
        %s380 = scalar_select %p379, %s24, 1
        %s381 = scalar_lea.vmem %s2, %s380
        %v383 = vld [vmem:[%s378] sm:$0x1]
        %vm384 = vcmp.ne.s32.totalorder %v383, 0
        %v385 = vlaneseq
        %v386 = vshrl.u32 %v385, 7
        %v387 = vlaneseq
        %v388 = vand.u32 %v387, 127
        %vm389 = vcmp.le.s32.totalorder %v388, %v386
        %v390 = vsel %vm384, 1, 0
        %v391 = vlaneseq
        %v392 = vshrl.u32 %v391, 7
        %v393 = vsub.s32 0, %v392
        %v394 = vrot.slane %v390, %v393
        %vm395 = vcmp.eq.s32.totalorder %v394, 1
        %vm396 = vmand %vm389, %vm395
        %v397 = vld [vmem:[%s381] sm:$0x1]
        %v398 = vsub.s32 %v397, 1
        %vm399 = vcmp.gt.s32.totalorder %v398, 0
        %v400 = vsel %vm399, %v398, 0
        %401 = vset.pattern.permute.xlu0 0
        %402 = vperm.xlu0 %401, %v400
        %v403 = vpop.permute.xlu0 %402
        %v404 = vlaneseq
        %v405 = vshrl.u32 %v404, 7
        %v406 = vsub.s32 0, %v405
        %v407 = vrot.slane %v403, %v406
        %vm408 = vcmp.le.s32.totalorder %v388, %v407
        %vm409 = vmand %vm408, %vm384
        %vm410 = vcmp.eq.s32.totalorder %v388, %v407
        %v411 = vsel %vm410, 1, 0
        %v412 = vcvt.s32.f32 %v411
        %414 = vbcast.lane.b32.xlu0 %v412, 256
        %v415 = vpop.permute.xlu0 %414
        %v416 = vld [vmem:[%s375] sm:$0xff]
        %v417 = vld [vmem:[%s9] sm:$0x3f]
        %v418 = vld [vmem:[%s3] sm:$0xf]
        %v419 = vld [vmem:[%s3 + $0x4] sm:$0xf]
        %v420 = vld [vmem:[%s3 + $0x8] sm:$0xf]
        %v421 = vld [vmem:[%s3 + $0xc] sm:$0xf]
        %v422 = vpack.c.bf16 %v416, %v416
        %v423 = vld [vmem:[%s4] sm:$0x1]
        %v425 = vlaneseq
        %v426 = vshrl.u32 %v425, 7
        %v427 = vsub.s32 0, %v426
        %v428 = vrot.slane %v423, %v427
        %v434 = vunpack.c.l.b16 %v418
        %v435 = vunpack.c.l.b16 %v419
        %v436 = vunpack.c.l.b16 %v420
        %v437 = vunpack.c.l.b16 %v421
        %v438 = vpack.c.b16 %v435, %v434
        %v439 = vpack.c.b16 %v437, %v436
        %vm442 = vcmask 261120
        %v444 = vsel %vm442, %v422, 0
        %446 = vmatprep.subr.bf16.mxu0 0
        %447 = vmatpush1.bf16.msra.mxu0 %v438
        %448 = vmatprep.subr.bf16.mxu0 0
        %449 = vmatpush1.bf16.msra.mxu0 %v439
        %450 = vmatprep.subr.bf16.mxu0 0
        %451 = vmatpush1.bf16.msra.mxu0 0
        %452 = vmatprep.subr.bf16.mxu0 0
        %453 = vmatpush1.bf16.msra.mxu0 0
        %454 = vmatprep.subr.bf16.mxu0 0
        %455 = vmatpush1.bf16.msra.mxu0 0
        %456 = vmatprep.subr.bf16.mxu0 0
        %457 = vmatpush1.bf16.msra.mxu0 0
        %458 = vmatprep.subr.bf16.mxu0 0
        %459 = vmatpush1.bf16.msra.mxu0 0
        %460 = vmatprep.subr.bf16.mxu0 0
        %461 = vmatpush1.bf16.msra.mxu0 0
        %462 = vmatprep.subr.bf16.mxu0 0
        %463 = vmatpush1.bf16.msra.mxu0 0
        %464 = vmatprep.subr.bf16.mxu0 0
        %465 = vmatpush1.bf16.msra.mxu0 0
        %466 = vmatprep.subr.bf16.mxu0 0
        %467 = vmatpush1.bf16.msra.mxu0 0
        %468 = vmatprep.subr.bf16.mxu0 0
        %469 = vmatpush1.bf16.msra.mxu0 0
        %470 = vmatprep.subr.bf16.mxu0 0
        %471 = vmatpush1.bf16.msra.mxu0 0
        %472 = vmatprep.subr.bf16.mxu0 0
        %473 = vmatpush1.bf16.msra.mxu0 0
        %474 = vmatprep.subr.bf16.mxu0 0
        %475 = vmatpush1.bf16.msra.mxu0 0
        %476 = vmatprep.subr.bf16.mxu0 0
        %477 = vmatpush1.bf16.msra.mxu0 0
        %478 = vmatprep.mubr.bf16.mxu0 0
        %479 = vmatmul.mubr.bf16.gmra.mrb[0].mxu0 %v444
        %v480 = vpop.f32.mrb[0].mxu0
        %v481 = vadd.f32 %v428, %v480
        %v482 = vpop.f32.mrb[0].mxu0
        %v483 = vpop.f32.mrb[0].mxu0
        %v484 = vpop.f32.mrb[0].mxu0
        %485 = vdwg.mxu0
        %v486 = vpack.c.bf16 %v481, %v481
        %488 = vrot.lane.b32.xlu0 %v486, 96
        %v489 = vpop.permute.xlu0 %488
        %v491 = vsel %vm442, %v486, 0
        %v494 = vsel %vm442, %v489, 0
        %496 = vmatprep.subr.bf16.mxu0 0
        %497 = vmatpush1.bf16.xpose.msra.mxu0 %v494
        %498 = vmatprep.subr.bf16.mxu0 0
        %499 = vmatpush1.bf16.xpose.msra.mxu0 0
        %500 = vmatprep.subr.bf16.mxu0 0
        %501 = vmatpush1.bf16.xpose.msra.mxu0 0
        %502 = vmatprep.subr.bf16.mxu0 0
        %503 = vmatpush1.bf16.xpose.msra.mxu0 0
        %504 = vmatprep.subr.bf16.mxu0 0
        %505 = vmatpush1.bf16.xpose.msra.mxu0 0
        %506 = vmatprep.subr.bf16.mxu0 0
        %507 = vmatpush1.bf16.xpose.msra.mxu0 0
        %508 = vmatprep.subr.bf16.mxu0 0
        %509 = vmatpush1.bf16.xpose.msra.mxu0 0
        %510 = vmatprep.subr.bf16.mxu0 0
        %511 = vmatpush1.bf16.xpose.msra.mxu0 0
        %512 = vmatprep.subr.bf16.mxu0 0
        %513 = vmatpush1.bf16.xpose.msra.mxu0 0
        %514 = vmatprep.subr.bf16.mxu0 0
        %515 = vmatpush1.bf16.xpose.msra.mxu0 0
        %516 = vmatprep.subr.bf16.mxu0 0
        %517 = vmatpush1.bf16.xpose.msra.mxu0 0
        %518 = vmatprep.subr.bf16.mxu0 0
        %519 = vmatpush1.bf16.xpose.msra.mxu0 0
        %520 = vmatprep.subr.bf16.mxu0 0
        %521 = vmatpush1.bf16.xpose.msra.mxu0 0
        %522 = vmatprep.subr.bf16.mxu0 0
        %523 = vmatpush1.bf16.xpose.msra.mxu0 0
        %524 = vmatprep.subr.bf16.mxu0 0
        %525 = vmatpush1.bf16.xpose.msra.mxu0 0
        %526 = vmatprep.subr.bf16.mxu0 0
        %527 = vmatpush1.bf16.xpose.msra.mxu0 0
        %528 = vmatprep.mubr.bf16.mxu0 0
        %529 = vmatmul.mubr.bf16.gmra.mrb[0].mxu0 %v491
        %v530 = vpop.f32.mrb[0].mxu0
        %v531 = vadd.f32 0.0, %v530
        %v532 = vpop.f32.mrb[0].mxu0
        %v533 = vpop.f32.mrb[0].mxu0
        %v534 = vpop.f32.mrb[0].mxu0
        %535 = vdwg.mxu0
        %v536 = vsel %vm396, %v531, -1e+09
        %vm537 = vcmask 64512
        %v538 = vsel %vm537, %v536, -inf
        %539 = vmax.xlane.f32.xlu0 %v538
        %v540 = vpop.xlane.xlu0 %539
        %v541 = vsub.f32 %v536, %v540
        %v542 = vmul.f32 %v541, 1.442695
        %v543 = vpow.pop %v542
        %v544 = vsel %vm537, %v543, 0.0
        %545 = vadd.xlane.f32.xlu0 %v544
        %v546 = vpop.xlane.xlu0 %545
        %v547 = vrcp.pop %v546
        %v548 = vmul.f32 %v543, %v547
        %v549 = vpack.c.bf16 %v548, %v548
        %550 = vrot.lane.b32.xlu0 %v486, 64
        %v551 = vpop.permute.xlu0 %550
        %v553 = vsel %vm537, %v549, 0
        %vm555 = vcmask 1043456
        %v557 = vsel %vm555, %v551, 0
        %559 = vmatprep.subr.bf16.mxu0 0
        %560 = vmatpush1.bf16.msra.mxu0 %v557
        %561 = vmatprep.subr.bf16.mxu0 0
        %562 = vmatpush1.bf16.msra.mxu0 0
        %563 = vmatprep.subr.bf16.mxu0 0
        %564 = vmatpush1.bf16.msra.mxu0 0
        %565 = vmatprep.subr.bf16.mxu0 0
        %566 = vmatpush1.bf16.msra.mxu0 0
        %567 = vmatprep.subr.bf16.mxu0 0
        %568 = vmatpush1.bf16.msra.mxu0 0
        %569 = vmatprep.subr.bf16.mxu0 0
        %570 = vmatpush1.bf16.msra.mxu0 0
        %571 = vmatprep.subr.bf16.mxu0 0
        %572 = vmatpush1.bf16.msra.mxu0 0
        %573 = vmatprep.subr.bf16.mxu0 0
        %574 = vmatpush1.bf16.msra.mxu0 0
        %575 = vmatprep.subr.bf16.mxu0 0
        %576 = vmatpush1.bf16.msra.mxu0 0
        %577 = vmatprep.subr.bf16.mxu0 0
        %578 = vmatpush1.bf16.msra.mxu0 0
        %579 = vmatprep.subr.bf16.mxu0 0
        %580 = vmatpush1.bf16.msra.mxu0 0
        %581 = vmatprep.subr.bf16.mxu0 0
        %582 = vmatpush1.bf16.msra.mxu0 0
        %583 = vmatprep.subr.bf16.mxu0 0
        %584 = vmatpush1.bf16.msra.mxu0 0
        %585 = vmatprep.subr.bf16.mxu0 0
        %586 = vmatpush1.bf16.msra.mxu0 0
        %587 = vmatprep.subr.bf16.mxu0 0
        %588 = vmatpush1.bf16.msra.mxu0 0
        %589 = vmatprep.subr.bf16.mxu0 0
        %590 = vmatpush1.bf16.msra.mxu0 0
        %591 = vmatprep.mubr.bf16.mxu0 0
        %592 = vmatmul.mubr.bf16.gmra.mrb[0].mxu0 %v553
        %v593 = vpop.f32.mrb[0].mxu0
        %v594 = vadd.f32 0.0, %v593
        %v595 = vpop.f32.mrb[0].mxu0
        %v596 = vpop.f32.mrb[0].mxu0
        %v597 = vpop.f32.mrb[0].mxu0
        %598 = vdwg.mxu0
        %v599 = vld [vmem:[%s5] sm:$0xf]
        %v600 = vld [vmem:[%s5 + $0x4] sm:$0xf]
        %v601 = vld [vmem:[%s5 + $0x8] sm:$0xf]
        %v602 = vld [vmem:[%s5 + $0xc] sm:$0xf]
        %v603 = vpack.c.bf16 %v594, %v594
        %v604 = vlaneseq
        %v605 = vshrl.u32 %v604, 7
        %v606 = vsub.s32 0, %v605
        %v607 = vrot.slane %v417, %v606
        %v612 = vunpack.c.l.b16 %v599
        %v613 = vunpack.c.l.b16 %v600
        %v614 = vunpack.c.l.b16 %v601
        %v615 = vunpack.c.l.b16 %v602
        %v616 = vpack.c.b16 %v613, %v612
        %v617 = vpack.c.b16 %v615, %v614
        %v621 = vsel %vm442, %v603, 0
        %623 = vmatprep.subr.bf16.mxu0 0
        %624 = vmatpush1.bf16.msra.mxu0 %v616
        %625 = vmatprep.subr.bf16.mxu0 0
        %626 = vmatpush1.bf16.msra.mxu0 %v617
        %627 = vmatprep.subr.bf16.mxu0 0
        %628 = vmatpush1.bf16.msra.mxu0 0
        %629 = vmatprep.subr.bf16.mxu0 0
        %630 = vmatpush1.bf16.msra.mxu0 0
        %631 = vmatprep.subr.bf16.mxu0 0
        %632 = vmatpush1.bf16.msra.mxu0 0
        %633 = vmatprep.subr.bf16.mxu0 0
        %634 = vmatpush1.bf16.msra.mxu0 0
        %635 = vmatprep.subr.bf16.mxu0 0
        %636 = vmatpush1.bf16.msra.mxu0 0
        %637 = vmatprep.subr.bf16.mxu0 0
        %638 = vmatpush1.bf16.msra.mxu0 0
        %639 = vmatprep.subr.bf16.mxu0 0
        %640 = vmatpush1.bf16.msra.mxu0 0
        %641 = vmatprep.subr.bf16.mxu0 0
        %642 = vmatpush1.bf16.msra.mxu0 0
        %643 = vmatprep.subr.bf16.mxu0 0
        %644 = vmatpush1.bf16.msra.mxu0 0
        %645 = vmatprep.subr.bf16.mxu0 0
        %646 = vmatpush1.bf16.msra.mxu0 0
        %647 = vmatprep.subr.bf16.mxu0 0
        %648 = vmatpush1.bf16.msra.mxu0 0
        %649 = vmatprep.subr.bf16.mxu0 0
        %650 = vmatpush1.bf16.msra.mxu0 0
        %651 = vmatprep.subr.bf16.mxu0 0
        %652 = vmatpush1.bf16.msra.mxu0 0
        %653 = vmatprep.subr.bf16.mxu0 0
        %654 = vmatpush1.bf16.msra.mxu0 0
        %655 = vmatprep.mubr.bf16.mxu0 0
        %656 = vmatmul.mubr.bf16.gmra.mrb[0].mxu0 %v621
        %v657 = vpop.f32.mrb[0].mxu0
        %v658 = vadd.f32 %v607, %v657
        %v659 = vpop.f32.mrb[0].mxu0
        %v660 = vpop.f32.mrb[0].mxu0
        %v661 = vpop.f32.mrb[0].mxu0
        %662 = vdwg.mxu0
        %v663 = vadd.f32 %v416, %v658
        %v664 = vsel %vm442, %v663, 0.0
        %665 = vadd.xlane.f32.xlu0 %v664
        %v666 = vpop.xlane.xlu0 %665
        %v667 = vrcp.pop 32.0
        %v668 = vmul.f32 %v666, %v667
        %v669 = vsub.f32 %v663, %v668
        %v670 = vmul.f32 %v669, %v669
        %v671 = vsel %vm442, %v670, 0.0
        %672 = vadd.xlane.f32.xlu0 %v671
        %v673 = vpop.xlane.xlu0 %672
        %v674 = vmul.f32 %v673, %v667
        %v675 = vadd.f32 %v674, 1e-05
        %v676 = vrsqrt.pop %v675
        %v677 = vmul.f32 %v669, %v676
        %v678 = vlaneseq
        %v679 = vshrl.u32 %v678, 7
        %v680 = vsub.s32 1, %v679
        %v681 = vrot.slane %v417, %v680
        %v682 = vmul.f32 %v677, %v681
        %v683 = vlaneseq
        %v684 = vshrl.u32 %v683, 7
        %v685 = vsub.s32 2, %v684
        %v686 = vrot.slane %v417, %v685
        %v687 = vadd.f32 %v682, %v686
        %v688 = vld [vmem:[%s6] sm:$0xf]
        %v689 = vld [vmem:[%s6 + $0x4] sm:$0xf]
        %v690 = vld [vmem:[%s6 + $0x8] sm:$0xf]
        %v691 = vld [vmem:[%s6 + $0xc] sm:$0xf]
        %v692 = vpack.c.bf16 %v687, %v687
        %v693 = vld [vmem:[%s7] sm:$0x1]
        %v695 = vlaneseq
        %v696 = vshrl.u32 %v695, 7
        %v697 = vsub.s32 0, %v696
        %v698 = vrot.slane %v693, %v697
        %v704 = vunpack.c.l.b16 %v688
        %v705 = vunpack.c.l.b16 %v689
        %v706 = vunpack.c.l.b16 %v690
        %v707 = vunpack.c.l.b16 %v691
        %v708 = vpack.c.b16 %v705, %v704
        %v709 = vpack.c.b16 %v707, %v706
        %v713 = vsel %vm442, %v692, 0
        %715 = vmatprep.subr.bf16.mxu0 0
        %716 = vmatpush1.bf16.msra.mxu0 %v708
        %717 = vmatprep.subr.bf16.mxu0 0
        %718 = vmatpush1.bf16.msra.mxu0 %v709
        %719 = vmatprep.subr.bf16.mxu0 0
        %720 = vmatpush1.bf16.msra.mxu0 0
        %721 = vmatprep.subr.bf16.mxu0 0
        %722 = vmatpush1.bf16.msra.mxu0 0
        %723 = vmatprep.subr.bf16.mxu0 0
        %724 = vmatpush1.bf16.msra.mxu0 0
        %725 = vmatprep.subr.bf16.mxu0 0
        %726 = vmatpush1.bf16.msra.mxu0 0
        %727 = vmatprep.subr.bf16.mxu0 0
        %728 = vmatpush1.bf16.msra.mxu0 0
        %729 = vmatprep.subr.bf16.mxu0 0
        %730 = vmatpush1.bf16.msra.mxu0 0
        %731 = vmatprep.subr.bf16.mxu0 0
        %732 = vmatpush1.bf16.msra.mxu0 0
        %733 = vmatprep.subr.bf16.mxu0 0
        %734 = vmatpush1.bf16.msra.mxu0 0
        %735 = vmatprep.subr.bf16.mxu0 0
        %736 = vmatpush1.bf16.msra.mxu0 0
        %737 = vmatprep.subr.bf16.mxu0 0
        %738 = vmatpush1.bf16.msra.mxu0 0
        %739 = vmatprep.subr.bf16.mxu0 0
        %740 = vmatpush1.bf16.msra.mxu0 0
        %741 = vmatprep.subr.bf16.mxu0 0
        %742 = vmatpush1.bf16.msra.mxu0 0
        %743 = vmatprep.subr.bf16.mxu0 0
        %744 = vmatpush1.bf16.msra.mxu0 0
        %745 = vmatprep.subr.bf16.mxu0 0
        %746 = vmatpush1.bf16.msra.mxu0 0
        %747 = vmatprep.mubr.bf16.mxu0 0
        %748 = vmatmul.mubr.bf16.gmra.mrb[0].mxu0 %v713
        %v749 = vpop.f32.mrb[0].mxu0
        %v750 = vadd.f32 %v698, %v749
        %v751 = vpop.f32.mrb[0].mxu0
        %v752 = vpop.f32.mrb[0].mxu0
        %v753 = vpop.f32.mrb[0].mxu0
        %754 = vdwg.mxu0
        %v755 = vmax.f32 %v750, 0.0
        %v756 = vld [vmem:[%s8] sm:$0xf]
        %v757 = vld [vmem:[%s8 + $0x4] sm:$0xf]
        %v758 = vld [vmem:[%s8 + $0x8] sm:$0xf]
        %v759 = vld [vmem:[%s8 + $0xc] sm:$0xf]
        %v760 = vld [vmem:[%s8 + $0x10] sm:$0xf]
        %v761 = vld [vmem:[%s8 + $0x14] sm:$0xf]
        %v762 = vld [vmem:[%s8 + $0x18] sm:$0xf]
        %v763 = vld [vmem:[%s8 + $0x1c] sm:$0xf]
        %v764 = vld [vmem:[%s8 + $0x20] sm:$0xf]
        %v765 = vld [vmem:[%s8 + $0x24] sm:$0xf]
        %v766 = vld [vmem:[%s8 + $0x28] sm:$0xf]
        %v767 = vld [vmem:[%s8 + $0x2c] sm:$0xf]
        %v768 = vld [vmem:[%s8 + $0x30] sm:$0xf]
        %v769 = vld [vmem:[%s8 + $0x34] sm:$0xf]
        %v770 = vld [vmem:[%s8 + $0x38] sm:$0xf]
        %v771 = vld [vmem:[%s8 + $0x3c] sm:$0xf]
        %v772 = vpack.c.bf16 %v755, %v755
        %v773 = vlaneseq
        %v774 = vshrl.u32 %v773, 7
        %v775 = vsub.s32 5, %v774
        %v776 = vrot.slane %v417, %v775
        %v793 = vunpack.c.l.b16 %v756
        %v794 = vunpack.c.l.b16 %v757
        %v795 = vunpack.c.l.b16 %v758
        %v796 = vunpack.c.l.b16 %v759
        %v797 = vunpack.c.l.b16 %v760
        %v798 = vunpack.c.l.b16 %v761
        %v799 = vunpack.c.l.b16 %v762
        %v800 = vunpack.c.l.b16 %v763
        %v801 = vunpack.c.l.b16 %v764
        %v802 = vunpack.c.l.b16 %v765
        %v803 = vunpack.c.l.b16 %v766
        %v804 = vunpack.c.l.b16 %v767
        %v805 = vunpack.c.l.b16 %v768
        %v806 = vunpack.c.l.b16 %v769
        %v807 = vunpack.c.l.b16 %v770
        %v808 = vunpack.c.l.b16 %v771
        %v809 = vpack.c.b16 %v794, %v793
        %v810 = vpack.c.b16 %v796, %v795
        %v811 = vpack.c.b16 %v798, %v797
        %v812 = vpack.c.b16 %v800, %v799
        %v813 = vpack.c.b16 %v802, %v801
        %v814 = vpack.c.b16 %v804, %v803
        %v815 = vpack.c.b16 %v806, %v805
        %v816 = vpack.c.b16 %v808, %v807
        %825 = vmatprep.subr.bf16.mxu0 0
        %826 = vmatpush1.bf16.msra.mxu0 %v809
        %827 = vmatprep.subr.bf16.mxu0 0
        %828 = vmatpush1.bf16.msra.mxu0 %v810
        %829 = vmatprep.subr.bf16.mxu0 0
        %830 = vmatpush1.bf16.msra.mxu0 %v811
        %831 = vmatprep.subr.bf16.mxu0 0
        %832 = vmatpush1.bf16.msra.mxu0 %v812
        %833 = vmatprep.subr.bf16.mxu0 0
        %834 = vmatpush1.bf16.msra.mxu0 %v813
        %835 = vmatprep.subr.bf16.mxu0 0
        %836 = vmatpush1.bf16.msra.mxu0 %v814
        %837 = vmatprep.subr.bf16.mxu0 0
        %838 = vmatpush1.bf16.msra.mxu0 %v815
        %839 = vmatprep.subr.bf16.mxu0 0
        %840 = vmatpush1.bf16.msra.mxu0 %v816
        %841 = vmatprep.subr.bf16.mxu0 0
        %842 = vmatpush1.bf16.msra.mxu0 0
        %843 = vmatprep.subr.bf16.mxu0 0
        %844 = vmatpush1.bf16.msra.mxu0 0
        %845 = vmatprep.subr.bf16.mxu0 0
        %846 = vmatpush1.bf16.msra.mxu0 0
        %847 = vmatprep.subr.bf16.mxu0 0
        %848 = vmatpush1.bf16.msra.mxu0 0
        %849 = vmatprep.subr.bf16.mxu0 0
        %850 = vmatpush1.bf16.msra.mxu0 0
        %851 = vmatprep.subr.bf16.mxu0 0
        %852 = vmatpush1.bf16.msra.mxu0 0
        %853 = vmatprep.subr.bf16.mxu0 0
        %854 = vmatpush1.bf16.msra.mxu0 0
        %855 = vmatprep.subr.bf16.mxu0 0
        %856 = vmatpush1.bf16.msra.mxu0 0
        %857 = vmatprep.mubr.bf16.mxu0 0
        %858 = vmatmul.mubr.bf16.gmra.mrb[0].mxu0 %v772
        %v859 = vpop.f32.mrb[0].mxu0
        %v860 = vadd.f32 %v776, %v859
        %v861 = vpop.f32.mrb[0].mxu0
        %v862 = vpop.f32.mrb[0].mxu0
        %v863 = vpop.f32.mrb[0].mxu0
        %864 = vdwg.mxu0
        %v865 = vadd.f32 %v687, %v860
        %v866 = vsel %vm442, %v865, 0.0
        %867 = vadd.xlane.f32.xlu0 %v866
        %v868 = vpop.xlane.xlu0 %867
        %v869 = vmul.f32 %v868, %v667
        %v870 = vsub.f32 %v865, %v869
        %v871 = vmul.f32 %v870, %v870
        %v872 = vsel %vm442, %v871, 0.0
        %873 = vadd.xlane.f32.xlu0 %v872
        %v874 = vpop.xlane.xlu0 %873
        %v875 = vmul.f32 %v874, %v667
        %v876 = vadd.f32 %v875, 1e-05
        %v877 = vrsqrt.pop %v876
        %v878 = vmul.f32 %v870, %v877
        %v879 = vlaneseq
        %v880 = vshrl.u32 %v879, 7
        %v881 = vsub.s32 3, %v880
        %v882 = vrot.slane %v417, %v881
        %v883 = vmul.f32 %v878, %v882
        %v884 = vlaneseq
        %v885 = vshrl.u32 %v884, 7
        %v886 = vsub.s32 4, %v885
        %v887 = vrot.slane %v417, %v886
        %v888 = vadd.f32 %v883, %v887
        %s889 = scalar_lea.vmem %s9, 8
        %v890 = vld [vmem:[%s889] sm:$0x3f]
        %v891 = vmul.f32 %v888, %v415
        %v892 = vsel %vm442, %v891, 0.0
        %v893 = vrot.slane %v892, 4
        %v894 = vadd.f32 %v892, %v893
        %v895 = vrot.slane %v894, 2
        %v896 = vadd.f32 %v894, %v895
        %v897 = vrot.slane %v896, 1
        %v898 = vadd.f32 %v896, %v897
        %s899 = scalar_lea.vmem %s3, 16
        %v900 = vld [vmem:[%s899] sm:$0xf]
        %v901 = vld [vmem:[%s899 + $0x4] sm:$0xf]
        %v902 = vld [vmem:[%s899 + $0x8] sm:$0xf]
        %v903 = vld [vmem:[%s899 + $0xc] sm:$0xf]
        %v904 = vpack.c.bf16 %v888, %v888
        %s905 = scalar_lea.vmem %s4, 1
        %v906 = vld [vmem:[%s905] sm:$0x1]
        %v908 = vlaneseq
        %v909 = vshrl.u32 %v908, 7
        %v910 = vsub.s32 0, %v909
        %v911 = vrot.slane %v906, %v910
        %v916 = vunpack.c.l.b16 %v900
        %v917 = vunpack.c.l.b16 %v901
        %v918 = vunpack.c.l.b16 %v902
        %v919 = vunpack.c.l.b16 %v903
        %v920 = vpack.c.b16 %v917, %v916
        %v921 = vpack.c.b16 %v919, %v918
        %922 = vrot.lane.b32.xlu0 %v920, 96
        %v923 = vpop.permute.xlu0 %922
        %924 = vrot.lane.b32.xlu0 %v921, 96
        %v925 = vpop.permute.xlu0 %924
        %928 = vrot.lane.b32.xlu0 %v911, 96
        %v929 = vpop.permute.xlu0 %928
        %v932 = vsel %vm442, %v904, 0
        %934 = vmatprep.subr.bf16.mxu0 0
        %935 = vmatpush1.bf16.msra.mxu0 %v923
        %936 = vmatprep.subr.bf16.mxu0 0
        %937 = vmatpush1.bf16.msra.mxu0 %v925
        %938 = vmatprep.subr.bf16.mxu0 0
        %939 = vmatpush1.bf16.msra.mxu0 0
        %940 = vmatprep.subr.bf16.mxu0 0
        %941 = vmatpush1.bf16.msra.mxu0 0
        %942 = vmatprep.subr.bf16.mxu0 0
        %943 = vmatpush1.bf16.msra.mxu0 0
        %944 = vmatprep.subr.bf16.mxu0 0
        %945 = vmatpush1.bf16.msra.mxu0 0
        %946 = vmatprep.subr.bf16.mxu0 0
        %947 = vmatpush1.bf16.msra.mxu0 0
        %948 = vmatprep.subr.bf16.mxu0 0
        %949 = vmatpush1.bf16.msra.mxu0 0
        %950 = vmatprep.subr.bf16.mxu0 0
        %951 = vmatpush1.bf16.msra.mxu0 0
        %952 = vmatprep.subr.bf16.mxu0 0
        %953 = vmatpush1.bf16.msra.mxu0 0
        %954 = vmatprep.subr.bf16.mxu0 0
        %955 = vmatpush1.bf16.msra.mxu0 0
        %956 = vmatprep.subr.bf16.mxu0 0
        %957 = vmatpush1.bf16.msra.mxu0 0
        %958 = vmatprep.subr.bf16.mxu0 0
        %959 = vmatpush1.bf16.msra.mxu0 0
        %960 = vmatprep.subr.bf16.mxu0 0
        %961 = vmatpush1.bf16.msra.mxu0 0
        %962 = vmatprep.subr.bf16.mxu0 0
        %963 = vmatpush1.bf16.msra.mxu0 0
        %964 = vmatprep.subr.bf16.mxu0 0
        %965 = vmatpush1.bf16.msra.mxu0 0
        %966 = vmatprep.mubr.bf16.mxu0 0
        %967 = vmatmul.mubr.bf16.gmra.mrb[0].mxu0 %v932
        %v968 = vpop.f32.mrb[0].mxu0
        %v969 = vadd.f32 %v929, %v968
        %v970 = vpop.f32.mrb[0].mxu0
        %v971 = vpop.f32.mrb[0].mxu0
        %v972 = vpop.f32.mrb[0].mxu0
        %973 = vdwg.mxu0
        %v974 = vpack.c.bf16 %v898, %v898
        %v978 = vsel %vm442, %v974, 0
        %980 = vmatprep.subr.bf16.mxu0 0
        %981 = vmatpush1.bf16.msra.mxu0 %v920
        %982 = vmatprep.subr.bf16.mxu0 0
        %983 = vmatpush1.bf16.msra.mxu0 %v921
        %984 = vmatprep.subr.bf16.mxu0 0
        %985 = vmatpush1.bf16.msra.mxu0 0
        %986 = vmatprep.subr.bf16.mxu0 0
        %987 = vmatpush1.bf16.msra.mxu0 0
        %988 = vmatprep.subr.bf16.mxu0 0
        %989 = vmatpush1.bf16.msra.mxu0 0
        %990 = vmatprep.subr.bf16.mxu0 0
        %991 = vmatpush1.bf16.msra.mxu0 0
        %992 = vmatprep.subr.bf16.mxu0 0
        %993 = vmatpush1.bf16.msra.mxu0 0
        %994 = vmatprep.subr.bf16.mxu0 0
        %995 = vmatpush1.bf16.msra.mxu0 0
        %996 = vmatprep.subr.bf16.mxu0 0
        %997 = vmatpush1.bf16.msra.mxu0 0
        %998 = vmatprep.subr.bf16.mxu0 0
        %999 = vmatpush1.bf16.msra.mxu0 0
        %1000 = vmatprep.subr.bf16.mxu0 0
        %1001 = vmatpush1.bf16.msra.mxu0 0
        %1002 = vmatprep.subr.bf16.mxu0 0
        %1003 = vmatpush1.bf16.msra.mxu0 0
        %1004 = vmatprep.subr.bf16.mxu0 0
        %1005 = vmatpush1.bf16.msra.mxu0 0
        %1006 = vmatprep.subr.bf16.mxu0 0
        %1007 = vmatpush1.bf16.msra.mxu0 0
        %1008 = vmatprep.subr.bf16.mxu0 0
        %1009 = vmatpush1.bf16.msra.mxu0 0
        %1010 = vmatprep.subr.bf16.mxu0 0
        %1011 = vmatpush1.bf16.msra.mxu0 0
        %1012 = vmatprep.mubr.bf16.mxu0 0
        %1013 = vmatmul.mubr.bf16.gmra.mrb[0].mxu0 %v978
        %v1014 = vpop.f32.mrb[0].mxu0
        %v1015 = vadd.f32 %v906, %v1014
        %v1016 = vpop.f32.mrb[0].mxu0
        %v1017 = vpop.f32.mrb[0].mxu0
        %v1018 = vpop.f32.mrb[0].mxu0
        %1019 = vdwg.mxu0
        %v1020 = vlaneseq
        %v1021 = vshrl.u32 %v1020, 7
        %v1022 = vsub.s32 0, %v1021
        %v1023 = vrot.slane %v1015, %v1022
        %v1024 = vmul.f32 %v1023, %v969
        %v1025 = vsel %vm442, %v1024, 0.0
        %1026 = vadd.xlane.f32.xlu0 %v1025
        %v1027 = vpop.xlane.xlu0 %1026
        %v1029 = vlaneseq
        %v1030 = vshrl.u32 %v1029, 7
        %v1031 = vsub.s32 %v388, %v1030
        %v1032 = vrot.slane %v1027, %v1031
        %v1034 = vsel %vm409, %v1032, -1e+09
        %vm1035 = vcmask 57344
        %v1036 = vsel %vm1035, %v1034, -inf
        %1037 = vmax.xlane.f32.xlu0 %v1036
        %v1038 = vpop.xlane.xlu0 %1037
        %v1039 = vsub.f32 %v1034, %v1038
        %v1040 = vmul.f32 %v1039, 1.442695
        %v1041 = vpow.pop %v1040
        %v1042 = vsel %vm1035, %v1041, 0.0
        %1043 = vadd.xlane.f32.xlu0 %v1042
        %v1044 = vpop.xlane.xlu0 %1043
        %v1045 = vrcp.pop %v1044
        %v1046 = vmul.f32 %v1041, %v1045
        %v1047 = vlaneseq
        %v1048 = vshrl.u32 %v1047, 7
        %v1049 = vsub.s32 0, %v1048
        %v1050 = vrot.slane %v1046, %v1049
        %1052 = vbcast.lane.b32.xlu0 %v1050, 256
        %v1053 = vpop.permute.xlu0 %1052
        %v1054 = vmul.f32 %v1053, %v969
        %vm1055 = vcmask 523520
        %v1056 = vsel %vm1055, %v1054, 0.0
        %v1057 = vrot.slane %v1056, 4
        %v1058 = vadd.f32 %v1056, %v1057
        %v1059 = vrot.slane %v1058, 2
        %v1060 = vadd.f32 %v1058, %v1059
        %v1061 = vrot.slane %v1060, 1
        %v1062 = vadd.f32 %v1060, %v1061
        %s1063 = scalar_lea.vmem %s5, 16
        %v1064 = vld [vmem:[%s1063] sm:$0xf]
        %v1065 = vld [vmem:[%s1063 + $0x4] sm:$0xf]
        %v1066 = vld [vmem:[%s1063 + $0x8] sm:$0xf]
        %v1067 = vld [vmem:[%s1063 + $0xc] sm:$0xf]
        %v1068 = vpack.c.bf16 %v1062, %v1062
        %1070 = vrot.lane.b32.xlu0 %v1068, 96
        %v1071 = vpop.permute.xlu0 %1070
        %v1076 = vunpack.c.l.b16 %v1064
        %v1077 = vunpack.c.l.b16 %v1065
        %v1078 = vunpack.c.l.b16 %v1066
        %v1079 = vunpack.c.l.b16 %v1067
        %v1080 = vpack.c.b16 %v1077, %v1076
        %v1081 = vpack.c.b16 %v1079, %v1078
        %v1085 = vsel %vm442, %v1071, 0
        %1087 = vmatprep.subr.bf16.mxu0 0
        %1088 = vmatpush1.bf16.msra.mxu0 %v1080
        %1089 = vmatprep.subr.bf16.mxu0 0
        %1090 = vmatpush1.bf16.msra.mxu0 %v1081
        %1091 = vmatprep.subr.bf16.mxu0 0
        %1092 = vmatpush1.bf16.msra.mxu0 0
        %1093 = vmatprep.subr.bf16.mxu0 0
        %1094 = vmatpush1.bf16.msra.mxu0 0
        %1095 = vmatprep.subr.bf16.mxu0 0
        %1096 = vmatpush1.bf16.msra.mxu0 0
        %1097 = vmatprep.subr.bf16.mxu0 0
        %1098 = vmatpush1.bf16.msra.mxu0 0
        %1099 = vmatprep.subr.bf16.mxu0 0
        %1100 = vmatpush1.bf16.msra.mxu0 0
        %1101 = vmatprep.subr.bf16.mxu0 0
        %1102 = vmatpush1.bf16.msra.mxu0 0
        %1103 = vmatprep.subr.bf16.mxu0 0
        %1104 = vmatpush1.bf16.msra.mxu0 0
        %1105 = vmatprep.subr.bf16.mxu0 0
        %1106 = vmatpush1.bf16.msra.mxu0 0
        %1107 = vmatprep.subr.bf16.mxu0 0
        %1108 = vmatpush1.bf16.msra.mxu0 0
        %1109 = vmatprep.subr.bf16.mxu0 0
        %1110 = vmatpush1.bf16.msra.mxu0 0
        %1111 = vmatprep.subr.bf16.mxu0 0
        %1112 = vmatpush1.bf16.msra.mxu0 0
        %1113 = vmatprep.subr.bf16.mxu0 0
        %1114 = vmatpush1.bf16.msra.mxu0 0
        %1115 = vmatprep.subr.bf16.mxu0 0
        %1116 = vmatpush1.bf16.msra.mxu0 0
        %1117 = vmatprep.subr.bf16.mxu0 0
        %1118 = vmatpush1.bf16.msra.mxu0 0
        %1119 = vmatprep.mubr.bf16.mxu0 0
        %1120 = vmatmul.mubr.bf16.gmra.mrb[0].mxu0 %v1085
        %v1121 = vpop.f32.mrb[0].mxu0
        %v1122 = vadd.f32 %v890, %v1121
        %v1123 = vpop.f32.mrb[0].mxu0
        %v1124 = vpop.f32.mrb[0].mxu0
        %v1125 = vpop.f32.mrb[0].mxu0
        %1126 = vdwg.mxu0
        %v1127 = vadd.f32 %v898, %v1122
        %vm1128 = vcmask 253952
        %v1129 = vsel %vm1128, %v1127, 0.0
        %1130 = vadd.xlane.f32.xlu0 %v1129
        %v1131 = vpop.xlane.xlu0 %1130
        %v1132 = vmul.f32 %v1131, %v667
        %v1133 = vsub.f32 %v1127, %v1132
        %v1134 = vmul.f32 %v1133, %v1133
        %v1135 = vsel %vm1128, %v1134, 0.0
        %1136 = vadd.xlane.f32.xlu0 %v1135
        %v1137 = vpop.xlane.xlu0 %1136
        %v1138 = vmul.f32 %v1137, %v667
        %v1139 = vadd.f32 %v1138, 1e-05
        %v1140 = vrsqrt.pop %v1139
        %v1141 = vmul.f32 %v1133, %v1140
        %v1143 = vrot.slane %v890, 1
        %v1145 = vmul.f32 %v1141, %v1143
        %v1146 = vrot.slane %v890, 2
        %v1148 = vadd.f32 %v1145, %v1146
        %s1149 = scalar_lea.vmem %s6, 16
        %v1150 = vld [vmem:[%s1149] sm:$0xf]
        %v1151 = vld [vmem:[%s1149 + $0x4] sm:$0xf]
        %v1152 = vld [vmem:[%s1149 + $0x8] sm:$0xf]
        %v1153 = vld [vmem:[%s1149 + $0xc] sm:$0xf]
        %v1154 = vpack.c.bf16 %v1148, %v1148
        %s1155 = scalar_lea.vmem %s7, 1
        %v1156 = vld [vmem:[%s1155] sm:$0x1]
        %v1161 = vunpack.c.l.b16 %v1150
        %v1162 = vunpack.c.l.b16 %v1151
        %v1163 = vunpack.c.l.b16 %v1152
        %v1164 = vunpack.c.l.b16 %v1153
        %v1165 = vpack.c.b16 %v1162, %v1161
        %v1166 = vpack.c.b16 %v1164, %v1163
        %v1170 = vsel %vm442, %v1154, 0
        %1172 = vmatprep.subr.bf16.mxu0 0
        %1173 = vmatpush1.bf16.msra.mxu0 %v1165
        %1174 = vmatprep.subr.bf16.mxu0 0
        %1175 = vmatpush1.bf16.msra.mxu0 %v1166
        %1176 = vmatprep.subr.bf16.mxu0 0
        %1177 = vmatpush1.bf16.msra.mxu0 0
        %1178 = vmatprep.subr.bf16.mxu0 0
        %1179 = vmatpush1.bf16.msra.mxu0 0
        %1180 = vmatprep.subr.bf16.mxu0 0
        %1181 = vmatpush1.bf16.msra.mxu0 0
        %1182 = vmatprep.subr.bf16.mxu0 0
        %1183 = vmatpush1.bf16.msra.mxu0 0
        %1184 = vmatprep.subr.bf16.mxu0 0
        %1185 = vmatpush1.bf16.msra.mxu0 0
        %1186 = vmatprep.subr.bf16.mxu0 0
        %1187 = vmatpush1.bf16.msra.mxu0 0
        %1188 = vmatprep.subr.bf16.mxu0 0
        %1189 = vmatpush1.bf16.msra.mxu0 0
        %1190 = vmatprep.subr.bf16.mxu0 0
        %1191 = vmatpush1.bf16.msra.mxu0 0
        %1192 = vmatprep.subr.bf16.mxu0 0
        %1193 = vmatpush1.bf16.msra.mxu0 0
        %1194 = vmatprep.subr.bf16.mxu0 0
        %1195 = vmatpush1.bf16.msra.mxu0 0
        %1196 = vmatprep.subr.bf16.mxu0 0
        %1197 = vmatpush1.bf16.msra.mxu0 0
        %1198 = vmatprep.subr.bf16.mxu0 0
        %1199 = vmatpush1.bf16.msra.mxu0 0
        %1200 = vmatprep.subr.bf16.mxu0 0
        %1201 = vmatpush1.bf16.msra.mxu0 0
        %1202 = vmatprep.subr.bf16.mxu0 0
        %1203 = vmatpush1.bf16.msra.mxu0 0
        %1204 = vmatprep.mubr.bf16.mxu0 0
        %1205 = vmatmul.mubr.bf16.gmra.mrb[0].mxu0 %v1170
        %v1206 = vpop.f32.mrb[0].mxu0
        %v1207 = vadd.f32 %v1156, %v1206
        %v1208 = vpop.f32.mrb[0].mxu0
        %v1209 = vpop.f32.mrb[0].mxu0
        %v1210 = vpop.f32.mrb[0].mxu0
        %1211 = vdwg.mxu0
        %v1212 = vmax.f32 %v1207, 0.0
        %s1213 = scalar_lea.vmem %s8, 64
        %v1214 = vld [vmem:[%s1213] sm:$0xf]
        %v1215 = vld [vmem:[%s1213 + $0x4] sm:$0xf]
        %v1216 = vld [vmem:[%s1213 + $0x8] sm:$0xf]
        %v1217 = vld [vmem:[%s1213 + $0xc] sm:$0xf]
        %v1218 = vld [vmem:[%s1213 + $0x10] sm:$0xf]
        %v1219 = vld [vmem:[%s1213 + $0x14] sm:$0xf]
        %v1220 = vld [vmem:[%s1213 + $0x18] sm:$0xf]
        %v1221 = vld [vmem:[%s1213 + $0x1c] sm:$0xf]
        %v1222 = vld [vmem:[%s1213 + $0x20] sm:$0xf]
        %v1223 = vld [vmem:[%s1213 + $0x24] sm:$0xf]
        %v1224 = vld [vmem:[%s1213 + $0x28] sm:$0xf]
        %v1225 = vld [vmem:[%s1213 + $0x2c] sm:$0xf]
        %v1226 = vld [vmem:[%s1213 + $0x30] sm:$0xf]
        %v1227 = vld [vmem:[%s1213 + $0x34] sm:$0xf]
        %v1228 = vld [vmem:[%s1213 + $0x38] sm:$0xf]
        %v1229 = vld [vmem:[%s1213 + $0x3c] sm:$0xf]
        %v1230 = vpack.c.bf16 %v1212, %v1212
        %v1247 = vunpack.c.l.b16 %v1214
        %v1248 = vunpack.c.l.b16 %v1215
        %v1249 = vunpack.c.l.b16 %v1216
        %v1250 = vunpack.c.l.b16 %v1217
        %v1251 = vunpack.c.l.b16 %v1218
        %v1252 = vunpack.c.l.b16 %v1219
        %v1253 = vunpack.c.l.b16 %v1220
        %v1254 = vunpack.c.l.b16 %v1221
        %v1255 = vunpack.c.l.b16 %v1222
        %v1256 = vunpack.c.l.b16 %v1223
        %v1257 = vunpack.c.l.b16 %v1224
        %v1258 = vunpack.c.l.b16 %v1225
        %v1259 = vunpack.c.l.b16 %v1226
        %v1260 = vunpack.c.l.b16 %v1227
        %v1261 = vunpack.c.l.b16 %v1228
        %v1262 = vunpack.c.l.b16 %v1229
        %v1263 = vpack.c.b16 %v1248, %v1247
        %v1264 = vpack.c.b16 %v1250, %v1249
        %v1265 = vpack.c.b16 %v1252, %v1251
        %v1266 = vpack.c.b16 %v1254, %v1253
        %v1267 = vpack.c.b16 %v1256, %v1255
        %v1268 = vpack.c.b16 %v1258, %v1257
        %v1269 = vpack.c.b16 %v1260, %v1259
        %v1270 = vpack.c.b16 %v1262, %v1261
        %v1279 = vrot.slane %v890, 5
        %1281 = vmatprep.subr.bf16.mxu0 0
        %1282 = vmatpush1.bf16.msra.mxu0 %v1263
        %1283 = vmatprep.subr.bf16.mxu0 0
        %1284 = vmatpush1.bf16.msra.mxu0 %v1264
        %1285 = vmatprep.subr.bf16.mxu0 0
        %1286 = vmatpush1.bf16.msra.mxu0 %v1265
        %1287 = vmatprep.subr.bf16.mxu0 0
        %1288 = vmatpush1.bf16.msra.mxu0 %v1266
        %1289 = vmatprep.subr.bf16.mxu0 0
        %1290 = vmatpush1.bf16.msra.mxu0 %v1267
        %1291 = vmatprep.subr.bf16.mxu0 0
        %1292 = vmatpush1.bf16.msra.mxu0 %v1268
        %1293 = vmatprep.subr.bf16.mxu0 0
        %1294 = vmatpush1.bf16.msra.mxu0 %v1269
        %1295 = vmatprep.subr.bf16.mxu0 0
        %1296 = vmatpush1.bf16.msra.mxu0 %v1270
        %1297 = vmatprep.subr.bf16.mxu0 0
        %1298 = vmatpush1.bf16.msra.mxu0 0
        %1299 = vmatprep.subr.bf16.mxu0 0
        %1300 = vmatpush1.bf16.msra.mxu0 0
        %1301 = vmatprep.subr.bf16.mxu0 0
        %1302 = vmatpush1.bf16.msra.mxu0 0
        %1303 = vmatprep.subr.bf16.mxu0 0
        %1304 = vmatpush1.bf16.msra.mxu0 0
        %1305 = vmatprep.subr.bf16.mxu0 0
        %1306 = vmatpush1.bf16.msra.mxu0 0
        %1307 = vmatprep.subr.bf16.mxu0 0
        %1308 = vmatpush1.bf16.msra.mxu0 0
        %1309 = vmatprep.subr.bf16.mxu0 0
        %1310 = vmatpush1.bf16.msra.mxu0 0
        %1311 = vmatprep.subr.bf16.mxu0 0
        %1312 = vmatpush1.bf16.msra.mxu0 0
        %1313 = vmatprep.mubr.bf16.mxu0 0
        %1314 = vmatmul.mubr.bf16.gmra.mrb[0].mxu0 %v1230
        %v1315 = vpop.f32.mrb[0].mxu0
        %v1316 = vadd.f32 %v1279, %v1315
        %v1317 = vpop.f32.mrb[0].mxu0
        %v1318 = vpop.f32.mrb[0].mxu0
        %v1319 = vpop.f32.mrb[0].mxu0
        %1320 = vdwg.mxu0
        %v1321 = vadd.f32 %v1148, %v1316
        %v1322 = vsel %vm1128, %v1321, 0.0
        %1323 = vadd.xlane.f32.xlu0 %v1322
        %v1324 = vpop.xlane.xlu0 %1323
        %v1325 = vmul.f32 %v1324, %v667
        %v1326 = vsub.f32 %v1321, %v1325
        %v1327 = vmul.f32 %v1326, %v1326
        %v1328 = vsel %vm1128, %v1327, 0.0
        %1329 = vadd.xlane.f32.xlu0 %v1328
        %v1330 = vpop.xlane.xlu0 %1329
        %v1331 = vmul.f32 %v1330, %v667
        %v1332 = vadd.f32 %v1331, 1e-05
        %v1333 = vrsqrt.pop %v1332
        %v1334 = vmul.f32 %v1326, %v1333
        %v1335 = vrot.slane %v890, 3
        %v1337 = vmul.f32 %v1334, %v1335
        %v1338 = vrot.slane %v890, 4
        %v1340 = vadd.f32 %v1337, %v1338
        %1341 = vst.msk [vmem:[%s371] sm:$0x1] %vm1128, %v1340
        %s1342 = sand.u32 %s257, 1
        %s1343 = scalar_lea.sflag [#allocation3], %s1342
        %s1344 = sand.u32 %s257, 1
        %s1345 = scalar_lea.vmem [#allocation2], %s1344
        // Predicated region
        $region61: #{model_forward.1} parent=59 // pred_check
          %p1346 = pneg %p267
        $region62: #{model_forward.1} parent=59 // pred_check_branch
          %1348 = sbr.rel (%p1346) target = $region64
        $region63: #{model_forward.1} parent=59 // pred_region
          %s1350 = ssub.s32 16, 16
          %1351 = vsyncadd %s1343, %s1350
          %s1352 = smul.addr %s24, 16
          %s1353 = scalar_lea.hbm %s10, %s1352
          %s1355 = sshll.u32 %s1345, 4
          %s1356 = int_to_ptr.vmem [resolvable:$true] %s1355
          %1358 = dma.vmem_to_hbm [thread:$0]  %s1356, 16, %s1353, %s1343
        $region64: #{model_forward.1} parent=59 // pred_fallthru
          _
      $region60: #{model_forward.1} parent=5 // pred_fallthru
        _
      %p1359 = scmp.le.s32.totalorder 2, %s19
      // Predicated region
      $region65: #{model_forward.1} parent=5 // pred_check
        %p1360 = pneg %p1359
      $region66: #{model_forward.1} parent=5 // pred_check_branch
        %1362 = sbr.rel (%p1360) target = $region68
      $region67: #{model_forward.1} parent=5 // pred_region
        %s1363 = ssub.s32 %s19, 2
        // Predicated region
        $region69: #{model_forward.1} parent=67 // pred_check
          %p1364 = pneg %p273
        $region70: #{model_forward.1} parent=67 // pred_check_branch
          %1366 = sbr.rel (%p1364) target = $region72
        $region71: #{model_forward.1} parent=67 // pred_region
          %s1367 = sand.u32 %s258, 1
          %s1368 = scalar_lea.sflag [#allocation3], %s1367
          %s1369 = sand.u32 %s258, 1
          %s1370 = scalar_lea.vmem [#allocation2], %s1369
          %1371 = dma.done %s1368, 16
        $region72: #{model_forward.1} parent=67 // pred_fallthru
          _
      $region68: #{model_forward.1} parent=5 // pred_fallthru
        _
    $region6: #{model_forward.1} parent=1 // loop_footer
      %s23 = sadd.s32 1, %s19
    $region7: #{model_forward.1} parent=1 // loop_footer_branch
      %18 = sbr.rel target = $region3
    $region8: #{model_forward.1} parent=1 // loop_exit
      _
    %1372 = vsyncpa [#allocation3], 1
    %s1373 = scalar_lea.sflag [#allocation3], 1
    %1374 = vsyncpa %s1373, 1

</llo_original>
